<compile_context>
chip_gen: v7x
topology: tpu7x:2x2x1
jax: 0.10.0
libtpu: 0.0.40
codegen_flags: <defaults>
</compile_context>

<pallas_src>
import functools
import math

import jax
import jax.numpy as jnp
from jax import lax
from jax.experimental import pallas as pl
from jax.experimental.pallas import tpu as pltpu


# ----------------------------- Pallas kernel --------------------------------

def _fused_encoder_kernel(x_ref, wqkv_ref, bqkv_ref, wo_ref, bo_ref,
                          w1_ref, w2_ref, dec_ref, gamma_ref, beta_ref,
                          *outs_and_scratch, n_heads, eps, output_attention):
    if output_attention:
        o_ref, a_ref, act_sc = outs_and_scratch
    else:
        o_ref, act_sc = outs_and_scratch
        a_ref = None

    layer = pl.program_id(1)
    n_layers = pl.num_programs(1)

    # Layer 0: seed the VMEM-resident activation from the HBM input.
    @pl.when(layer == 0)
    def _():
        act_sc[...] = x_ref[0].astype(jnp.float32)

    x = act_sc[...]                                    # [L, D] f32, VMEM-resident
    L, D = x.shape
    dh = D // n_heads

    # ---- fused QKV projection (1/sqrt(dh) pre-folded into the Q columns) ----
    qkv = jnp.dot(x.astype(jnp.bfloat16), wqkv_ref[0],
                  preferred_element_type=jnp.float32) + bqkv_ref[0]   # [L, 3D]

    # ---- multi-head attention; context built lane-dense in registers --------
    ctx_parts = []
    for h in range(n_heads):
        q = qkv[:, h * dh:(h + 1) * dh].astype(jnp.bfloat16)
        k = qkv[:, D + h * dh:D + (h + 1) * dh].astype(jnp.bfloat16)
        v = qkv[:, 2 * D + h * dh:2 * D + (h + 1) * dh].astype(jnp.bfloat16)
        s = lax.dot_general(q, k, (((1,), (1,)), ((), ())),
                            preferred_element_type=jnp.float32)       # [L, L]
        p = jnp.exp(s - jnp.max(s, axis=-1, keepdims=True))
        a = p / jnp.sum(p, axis=-1, keepdims=True)       # exact divide (parity)
        ctx_parts.append(jnp.dot(a.astype(jnp.bfloat16), v,
                                 preferred_element_type=jnp.float32))
        if output_attention:
            a_ref[0, h] = a.astype(a_ref.dtype)
    ctx = jnp.concatenate(ctx_parts, axis=-1)            # lane-dense [L, D]

    # ---- output projection ---------------------------------------------------
    new_x = jnp.dot(ctx.astype(jnp.bfloat16), wo_ref[0],
                    preferred_element_type=jnp.float32) + bo_ref[0]

    dec = dec_ref[...]              # (I - MA) band matrix, loaded once (const idx)

    # x = x + dropout(new_x); x, _ = decomp1(x)   (eval mode: dropout = id)
    s1 = x + new_x
    x1 = jnp.dot(dec, s1.astype(jnp.bfloat16), preferred_element_type=jnp.float32)

    # y = conv2(relu(conv1(x)))     (kernel_size=1 Conv1d, bias=False)
    hdn = jnp.maximum(jnp.dot(x1.astype(jnp.bfloat16), w1_ref[0],
                              preferred_element_type=jnp.float32), 0.0)
    y = jnp.dot(hdn.astype(jnp.bfloat16), w2_ref[0],
                preferred_element_type=jnp.float32)

    # res, _ = decomp2(x + y)
    s2 = x1 + y
    out = jnp.dot(dec, s2.astype(jnp.bfloat16), preferred_element_type=jnp.float32)

    act_sc[...] = out                                    # carry to next layer

    # Last layer: my_Layernorm (LN over D, minus mean over L), single HBM write.
    @pl.when(layer == n_layers - 1)
    def _():
        mu = jnp.mean(out, axis=-1, keepdims=True)
        var = jnp.mean((out - mu) ** 2, axis=-1, keepdims=True)
        x_hat = (out - mu) * lax.rsqrt(var + eps) * gamma_ref[...] + beta_ref[...]
        seq_bias = jnp.mean(x_hat, axis=0, keepdims=True)   # mean over L
        o_ref[0] = (x_hat - seq_bias).astype(o_ref.dtype)


# ------------------------------ wrappers -------------------------------------

def decomp_matrix(L, kernel_size):
    """series_decomp (x - moving_avg(x)) as one [L, L] band matrix (I - MA), with
    AvgPool1d edge replication folded into the band weights (bf16 for the MXU)."""
    if kernel_size % 2 != 1:
        raise ValueError("moving_avg kernel_size must be odd to preserve length")
    pad = (kernel_size - 1) // 2
    pos = jnp.arange(L)[:, None] + jnp.arange(kernel_size)[None, :] - pad
    idx = jnp.clip(pos, 0, L - 1)                            # [L, k]
    ma = jnp.zeros((L, L), jnp.float32).at[
        jnp.arange(L)[:, None], idx].add(1.0 / kernel_size)
    # TODO(synk): for realistic Autoformer lengths (L=96-720) switch this
    # O(L^2 D) band matmul to k sublane-shifted adds via pltpu.roll (free XLU slot).
    return (jnp.eye(L, dtype=jnp.float32) - ma).astype(jnp.bfloat16)


def init_params(key, d_model, d_ff, n_layers, n_heads):
    """Stacked per-layer weights: bf16 matmul weights, f32 biases / LN params.
    The 1/sqrt(d_head) attention scale is folded into the Q projection."""
    dh = d_model // n_heads
    scale = 1.0 / math.sqrt(dh)
    wqkv, bqkv, wo, bo, w1, w2 = [], [], [], [], [], []
    for _ in range(n_layers):
        key, k0, k1, k2, k3 = jax.random.split(key, 5)
        wq = jax.random.normal(k0, (d_model, 3 * d_model), jnp.float32) * 0.1
        bq = jnp.zeros((1, 3 * d_model), jnp.float32)
        wq = wq.at[:, :d_model].multiply(scale)        # fold scale into Q weights
        bq = bq.at[:, :d_model].multiply(scale)        # ... and Q bias
        wqkv.append(wq)
        bqkv.append(bq)
        wo.append(jax.random.normal(k1, (d_model, d_model), jnp.float32) * 0.1)
        bo.append(jnp.zeros((1, d_model), jnp.float32))
        w1.append(jax.random.normal(k2, (d_model, d_ff), jnp.float32) * 0.1)
        w2.append(jax.random.normal(k3, (d_ff, d_model), jnp.float32) * 0.1)
    bf = lambda xs: jnp.stack(xs).astype(jnp.bfloat16)
    f32 = lambda xs: jnp.stack(xs).astype(jnp.float32)
    return dict(
        wqkv=bf(wqkv), bqkv=f32(bqkv), wo=bf(wo), bo=f32(bo),
        w1=bf(w1), w2=bf(w2),
        norm_gamma=jnp.ones((1, d_model), jnp.float32),
        norm_beta=jnp.zeros((1, d_model), jnp.float32),
    )


def encoder_forward(x, params, dec, n_heads, attn_mask=None,
                    output_attention=False, eps=1e-5):
    """conv_layers=None branch of the Autoformer Encoder, fully fused."""
    del attn_mask  # None in this configuration
    B, L, D = x.shape
    H = n_heads
    n_layers = params["wqkv"].shape[0]
    d_ff = params["w1"].shape[-1]

    kernel = functools.partial(_fused_encoder_kernel, n_heads=n_heads, eps=eps,
                               output_attention=output_attention)

    if output_attention:
        out_shape = (jax.ShapeDtypeStruct((B, L, D), x.dtype),
                     jax.ShapeDtypeStruct((B * n_layers, H, L, L), jnp.float32))
        out_specs = (pl.BlockSpec((1, L, D), lambda b, l: (b, 0, 0)),
                     pl.BlockSpec((1, H, L, L),
                                  lambda b, l: (b * n_layers + l, 0, 0, 0)))
    else:
        out_shape = jax.ShapeDtypeStruct((B, L, D), x.dtype)
        out_specs = pl.BlockSpec((1, L, D), lambda b, l: (b, 0, 0))

    res = pl.pallas_call(
        kernel,
        out_shape=out_shape,
        grid=(B, n_layers),
        in_specs=[
            pl.BlockSpec((1, L, D), lambda b, l: (b, 0, 0)),        # x
            pl.BlockSpec((1, D, 3 * D), lambda b, l: (l, 0, 0)),    # Wqkv (fused)
            pl.BlockSpec((1, 1, 3 * D), lambda b, l: (l, 0, 0)),    # bqkv
            pl.BlockSpec((1, D, D), lambda b, l: (l, 0, 0)),        # Wo
            pl.BlockSpec((1, 1, D), lambda b, l: (l, 0, 0)),        # bo
            pl.BlockSpec((1, D, d_ff), lambda b, l: (l, 0, 0)),     # W1 (conv1)
            pl.BlockSpec((1, d_ff, D), lambda b, l: (l, 0, 0)),     # W2 (conv2)
            pl.BlockSpec((L, L), lambda b, l: (0, 0)),              # I - MA
            pl.BlockSpec((1, D), lambda b, l: (0, 0)),              # LN gamma
            pl.BlockSpec((1, D), lambda b, l: (0, 0)),              # LN beta
        ],
        out_specs=out_specs,
        scratch_shapes=[pltpu.VMEM((L, D), jnp.float32)],           # resident act
        compiler_params=pltpu.CompilerParams(
            dimension_semantics=("parallel", "arbitrary")),
    )(x, params["wqkv"], params["bqkv"], params["wo"], params["bo"],
      params["w1"], params["w2"], dec, params["norm_gamma"], params["norm_beta"])

    if output_attention:
        out, attn_flat = res
        attn = attn_flat.reshape(B, n_layers, H, L, L)
        attns = [attn[:, i] for i in range(n_layers)]
    else:
        out = res
        attns = [None] * n_layers
    return out, attns


if __name__ == "__main__":
    B, L, D = 2, 16, 128          # batch, seq_len, d_model (lane-dense D)
    n_heads, d_ff = 4, 256
    e_layers, moving_avg = 2, 5   # odd moving_avg -> output length preserved

    key = jax.random.PRNGKey(0)
    key, xkey, pkey = jax.random.split(key, 3)
    x = jax.random.normal(xkey, (B, L, D), jnp.float32)
    params = init_params(pkey, D, d_ff, e_layers, n_heads)
    dec = decomp_matrix(L, moving_avg)

    # Default (fast) path: attention maps gated off.
    fwd = jax.jit(functools.partial(encoder_forward, n_heads=n_heads,
                                    output_attention=False))
    out, attns = fwd(x, params, dec)
    jax.block_until_ready(out)
    assert out.shape == (B, L, D)
    assert len(attns) == e_layers
    assert bool(jnp.all(jnp.isfinite(out)))

    # Exercise the gated attention-map output path once as well.
    fwd_attn = jax.jit(functools.partial(encoder_forward, n_heads=n_heads,
                                         output_attention=True))
    out2, attns2 = fwd_attn(x, params, dec)
    jax.block_until_ready(out2)
    for a in attns2:
        jax.block_until_ready(a)
    assert attns2[0].shape == (B, n_heads, L, L)
    assert bool(jnp.allclose(out, out2))

    print("KERNEL_OK")
</pallas_src>

<mosaic_0001>
module attributes {stable_mosaic.version = 11 : i64} {
  func.func @_fused_encoder_kernel(%arg0: i32, %arg1: i32, %arg2: memref<1x16x128xf32, #tpu.memory_space<vmem>>, %arg3: memref<1x128x384xbf16, #tpu.memory_space<vmem>>, %arg4: memref<1x1x384xf32, #tpu.memory_space<vmem>>, %arg5: memref<1x128x128xbf16, #tpu.memory_space<vmem>>, %arg6: memref<1x1x128xf32, #tpu.memory_space<vmem>>, %arg7: memref<1x128x256xbf16, #tpu.memory_space<vmem>>, %arg8: memref<1x256x128xbf16, #tpu.memory_space<vmem>>, %arg9: memref<16x16xbf16, #tpu.memory_space<vmem>>, %arg10: memref<1x128xf32, #tpu.memory_space<vmem>>, %arg11: memref<1x128xf32, #tpu.memory_space<vmem>>, %arg12: memref<1x16x128xf32, #tpu.memory_space<vmem>>, %arg13: memref<16x128xf32, #tpu.memory_space<vmem>>) attributes {dimension_semantics = [#tpu.dimension_semantics<parallel>, #tpu.dimension_semantics<arbitrary>], iteration_bounds = array<i64: 2, 2>, scalar_prefetch = 0 : i64, scratch_operands = 1 : i64, tpu.core_type = #tpu.core_type<tc>, window_params = [{transform_indices = @transform_0, window_bounds = array<i64: 1, 16, 128>}, {transform_indices = @transform_1, window_bounds = array<i64: 1, 128, 384>}, {transform_indices = @transform_2, window_bounds = array<i64: 1, 1, 384>}, {transform_indices = @transform_3, window_bounds = array<i64: 1, 128, 128>}, {transform_indices = @transform_4, window_bounds = array<i64: 1, 1, 128>}, {transform_indices = @transform_5, window_bounds = array<i64: 1, 128, 256>}, {transform_indices = @transform_6, window_bounds = array<i64: 1, 256, 128>}, {pipeline_mode = #tpu.pipeline_mode<synchronous>, transform_indices = @transform_7, window_bounds = array<i64: 16, 16>}, {pipeline_mode = #tpu.pipeline_mode<synchronous>, transform_indices = @transform_8, window_bounds = array<i64: 1, 128>}, {pipeline_mode = #tpu.pipeline_mode<synchronous>, transform_indices = @transform_9, window_bounds = array<i64: 1, 128>}, {transform_indices = @transform_10, window_bounds = array<i64: 1, 16, 128>}]} {
    %c0_i32 = arith.constant 0 : i32
    %0 = arith.cmpi eq, %arg1, %c0_i32 : i32
    %1 = arith.extui %0 : i1 to i32
    %c0_i32_0 = arith.constant 0 : i32
    %2 = arith.cmpi ne, %1, %c0_i32_0 : i32
    scf.if %2 {
      %c0_47 = arith.constant 0 : index
      %c0_48 = arith.constant 0 : index
      %c0_49 = arith.constant 0 : index
      %114 = vector.load %arg2[%c0_47, %c0_48, %c0_49] : memref<1x16x128xf32, #tpu.memory_space<vmem>>, vector<1x16x128xf32>
      %115 = vector.shape_cast %114 : vector<1x16x128xf32> to vector<16x128xf32>
      %c0_50 = arith.constant 0 : index
      %c0_51 = arith.constant 0 : index
      %116 = vector.load %arg13[%c0_50, %c0_51] : memref<16x128xf32, #tpu.memory_space<vmem>>, vector<16x128xf32>
      tpu.vector_store %arg13[%c0_50, %c0_51], %115 {strides = array<i32>} : memref<16x128xf32, #tpu.memory_space<vmem>>, vector<16x128xf32>,
    } else {
    }
    %c0 = arith.constant 0 : index
    %c0_1 = arith.constant 0 : index
    %3 = vector.load %arg13[%c0, %c0_1] : memref<16x128xf32, #tpu.memory_space<vmem>>, vector<16x128xf32>
    %4 = arith.truncf %3 : vector<16x128xf32> to vector<16x128xbf16>
    %c0_2 = arith.constant 0 : index
    %c0_3 = arith.constant 0 : index
    %c0_4 = arith.constant 0 : index
    %5 = vector.load %arg3[%c0_2, %c0_3, %c0_4] : memref<1x128x384xbf16, #tpu.memory_space<vmem>>, vector<1x128x384xbf16>
    %6 = vector.shape_cast %5 : vector<1x128x384xbf16> to vector<128x384xbf16>
    %cst = arith.constant dense<0.000000e+00> : vector<16x384xf32>
    %7 = tpu.matmul %4, %6, %cst {dimension_numbers = #tpu.dot_dimension_numbers<[1], [0], [0], [1], [0, 0, 1, 1], [], []>} : vector<16x128xbf16>, vector<128x384xbf16>, vector<16x384xf32> -> vector<16x384xf32>
    %c0_5 = arith.constant 0 : index
    %c0_6 = arith.constant 0 : index
    %c0_7 = arith.constant 0 : index
    %8 = vector.load %arg4[%c0_5, %c0_6, %c0_7] : memref<1x1x384xf32, #tpu.memory_space<vmem>>, vector<1x1x384xf32>
    %9 = vector.shape_cast %8 : vector<1x1x384xf32> to vector<1x384xf32>
    %10 = vector.broadcast %9 : vector<1x384xf32> to vector<16x384xf32>
    %11 = arith.addf %7, %10 : vector<16x384xf32>
    %12 = vector.extract_strided_slice %11 {offsets = [0, 0], sizes = [16, 32], strides = [1, 1]} : vector<16x384xf32> to vector<16x32xf32>
    %13 = arith.truncf %12 : vector<16x32xf32> to vector<16x32xbf16>
    %14 = vector.extract_strided_slice %11 {offsets = [0, 128], sizes = [16, 32], strides = [1, 1]} : vector<16x384xf32> to vector<16x32xf32>
    %15 = arith.truncf %14 : vector<16x32xf32> to vector<16x32xbf16>
    %16 = vector.extract_strided_slice %11 {offsets = [0, 256], sizes = [16, 32], strides = [1, 1]} : vector<16x384xf32> to vector<16x32xf32>
    %17 = arith.truncf %16 : vector<16x32xf32> to vector<16x32xbf16>
    %cst_8 = arith.constant dense<0.000000e+00> : vector<16x16xf32>
    %18 = tpu.matmul %13, %15, %cst_8 {dimension_numbers = #tpu.dot_dimension_numbers<[1], [1], [0], [0], [0, 0, 1, 0], [], []>} : vector<16x32xbf16>, vector<16x32xbf16>, vector<16x16xf32> -> vector<16x16xf32>
    %cst_9 = arith.constant dense<0xFF800000> : vector<16xf32>
    %19 = vector.multi_reduction <maximumf>, %18, %cst_9 [1] : vector<16x16xf32> to vector<16xf32>
    %20 = vector.shape_cast %19 : vector<16xf32> to vector<16x1xf32>
    %21 = vector.broadcast %20 : vector<16x1xf32> to vector<16x16xf32>
    %22 = arith.subf %18, %21 : vector<16x16xf32>
    %23 = math.exp %22 : vector<16x16xf32>
    %cst_10 = arith.constant dense<0.000000e+00> : vector<16xf32>
    %24 = vector.multi_reduction <add>, %23, %cst_10 [1] : vector<16x16xf32> to vector<16xf32>
    %25 = vector.shape_cast %24 : vector<16xf32> to vector<16x1xf32>
    %26 = vector.broadcast %25 : vector<16x1xf32> to vector<16x16xf32>
    %27 = arith.divf %23, %26 : vector<16x16xf32>
    %28 = arith.truncf %27 : vector<16x16xf32> to vector<16x16xbf16>
    %cst_11 = arith.constant dense<0.000000e+00> : vector<16x32xf32>
    %29 = tpu.matmul %28, %17, %cst_11 {dimension_numbers = #tpu.dot_dimension_numbers<[1], [0], [0], [1], [0, 0, 1, 1], [], []>} : vector<16x16xbf16>, vector<16x32xbf16>, vector<16x32xf32> -> vector<16x32xf32>
    %30 = vector.extract_strided_slice %11 {offsets = [0, 32], sizes = [16, 32], strides = [1, 1]} : vector<16x384xf32> to vector<16x32xf32>
    %31 = arith.truncf %30 : vector<16x32xf32> to vector<16x32xbf16>
    %32 = vector.extract_strided_slice %11 {offsets = [0, 160], sizes = [16, 32], strides = [1, 1]} : vector<16x384xf32> to vector<16x32xf32>
    %33 = arith.truncf %32 : vector<16x32xf32> to vector<16x32xbf16>
    %34 = vector.extract_strided_slice %11 {offsets = [0, 288], sizes = [16, 32], strides = [1, 1]} : vector<16x384xf32> to vector<16x32xf32>
    %35 = arith.truncf %34 : vector<16x32xf32> to vector<16x32xbf16>
    %cst_12 = arith.constant dense<0.000000e+00> : vector<16x16xf32>
    %36 = tpu.matmul %31, %33, %cst_12 {dimension_numbers = #tpu.dot_dimension_numbers<[1], [1], [0], [0], [0, 0, 1, 0], [], []>} : vector<16x32xbf16>, vector<16x32xbf16>, vector<16x16xf32> -> vector<16x16xf32>
    %cst_13 = arith.constant dense<0xFF800000> : vector<16xf32>
    %37 = vector.multi_reduction <maximumf>, %36, %cst_13 [1] : vector<16x16xf32> to vector<16xf32>
    %38 = vector.shape_cast %37 : vector<16xf32> to vector<16x1xf32>
    %39 = vector.broadcast %38 : vector<16x1xf32> to vector<16x16xf32>
    %40 = arith.subf %36, %39 : vector<16x16xf32>
    %41 = math.exp %40 : vector<16x16xf32>
    %cst_14 = arith.constant dense<0.000000e+00> : vector<16xf32>
    %42 = vector.multi_reduction <add>, %41, %cst_14 [1] : vector<16x16xf32> to vector<16xf32>
    %43 = vector.shape_cast %42 : vector<16xf32> to vector<16x1xf32>
    %44 = vector.broadcast %43 : vector<16x1xf32> to vector<16x16xf32>
    %45 = arith.divf %41, %44 : vector<16x16xf32>
    %46 = arith.truncf %45 : vector<16x16xf32> to vector<16x16xbf16>
    %cst_15 = arith.constant dense<0.000000e+00> : vector<16x32xf32>
    %47 = tpu.matmul %46, %35, %cst_15 {dimension_numbers = #tpu.dot_dimension_numbers<[1], [0], [0], [1], [0, 0, 1, 1], [], []>} : vector<16x16xbf16>, vector<16x32xbf16>, vector<16x32xf32> -> vector<16x32xf32>
    %48 = vector.extract_strided_slice %11 {offsets = [0, 64], sizes = [16, 32], strides = [1, 1]} : vector<16x384xf32> to vector<16x32xf32>
    %49 = arith.truncf %48 : vector<16x32xf32> to vector<16x32xbf16>
    %50 = vector.extract_strided_slice %11 {offsets = [0, 192], sizes = [16, 32], strides = [1, 1]} : vector<16x384xf32> to vector<16x32xf32>
    %51 = arith.truncf %50 : vector<16x32xf32> to vector<16x32xbf16>
    %52 = vector.extract_strided_slice %11 {offsets = [0, 320], sizes = [16, 32], strides = [1, 1]} : vector<16x384xf32> to vector<16x32xf32>
    %53 = arith.truncf %52 : vector<16x32xf32> to vector<16x32xbf16>
    %cst_16 = arith.constant dense<0.000000e+00> : vector<16x16xf32>
    %54 = tpu.matmul %49, %51, %cst_16 {dimension_numbers = #tpu.dot_dimension_numbers<[1], [1], [0], [0], [0, 0, 1, 0], [], []>} : vector<16x32xbf16>, vector<16x32xbf16>, vector<16x16xf32> -> vector<16x16xf32>
    %cst_17 = arith.constant dense<0xFF800000> : vector<16xf32>
    %55 = vector.multi_reduction <maximumf>, %54, %cst_17 [1] : vector<16x16xf32> to vector<16xf32>
    %56 = vector.shape_cast %55 : vector<16xf32> to vector<16x1xf32>
    %57 = vector.broadcast %56 : vector<16x1xf32> to vector<16x16xf32>
    %58 = arith.subf %54, %57 : vector<16x16xf32>
    %59 = math.exp %58 : vector<16x16xf32>
    %cst_18 = arith.constant dense<0.000000e+00> : vector<16xf32>
    %60 = vector.multi_reduction <add>, %59, %cst_18 [1] : vector<16x16xf32> to vector<16xf32>
    %61 = vector.shape_cast %60 : vector<16xf32> to vector<16x1xf32>
    %62 = vector.broadcast %61 : vector<16x1xf32> to vector<16x16xf32>
    %63 = arith.divf %59, %62 : vector<16x16xf32>
    %64 = arith.truncf %63 : vector<16x16xf32> to vector<16x16xbf16>
    %cst_19 = arith.constant dense<0.000000e+00> : vector<16x32xf32>
    %65 = tpu.matmul %64, %53, %cst_19 {dimension_numbers = #tpu.dot_dimension_numbers<[1], [0], [0], [1], [0, 0, 1, 1], [], []>} : vector<16x16xbf16>, vector<16x32xbf16>, vector<16x32xf32> -> vector<16x32xf32>
    %66 = vector.extract_strided_slice %11 {offsets = [0, 96], sizes = [16, 32], strides = [1, 1]} : vector<16x384xf32> to vector<16x32xf32>
    %67 = arith.truncf %66 : vector<16x32xf32> to vector<16x32xbf16>
    %68 = vector.extract_strided_slice %11 {offsets = [0, 224], sizes = [16, 32], strides = [1, 1]} : vector<16x384xf32> to vector<16x32xf32>
    %69 = arith.truncf %68 : vector<16x32xf32> to vector<16x32xbf16>
    %70 = vector.extract_strided_slice %11 {offsets = [0, 352], sizes = [16, 32], strides = [1, 1]} : vector<16x384xf32> to vector<16x32xf32>
    %71 = arith.truncf %70 : vector<16x32xf32> to vector<16x32xbf16>
    %cst_20 = arith.constant dense<0.000000e+00> : vector<16x16xf32>
    %72 = tpu.matmul %67, %69, %cst_20 {dimension_numbers = #tpu.dot_dimension_numbers<[1], [1], [0], [0], [0, 0, 1, 0], [], []>} : vector<16x32xbf16>, vector<16x32xbf16>, vector<16x16xf32> -> vector<16x16xf32>
    %cst_21 = arith.constant dense<0xFF800000> : vector<16xf32>
    %73 = vector.multi_reduction <maximumf>, %72, %cst_21 [1] : vector<16x16xf32> to vector<16xf32>
    %74 = vector.shape_cast %73 : vector<16xf32> to vector<16x1xf32>
    %75 = vector.broadcast %74 : vector<16x1xf32> to vector<16x16xf32>
    %76 = arith.subf %72, %75 : vector<16x16xf32>
    %77 = math.exp %76 : vector<16x16xf32>
    %cst_22 = arith.constant dense<0.000000e+00> : vector<16xf32>
    %78 = vector.multi_reduction <add>, %77, %cst_22 [1] : vector<16x16xf32> to vector<16xf32>
    %79 = vector.shape_cast %78 : vector<16xf32> to vector<16x1xf32>
    %80 = vector.broadcast %79 : vector<16x1xf32> to vector<16x16xf32>
    %81 = arith.divf %77, %80 : vector<16x16xf32>
    %82 = arith.truncf %81 : vector<16x16xf32> to vector<16x16xbf16>
    %cst_23 = arith.constant dense<0.000000e+00> : vector<16x32xf32>
    %83 = tpu.matmul %82, %71, %cst_23 {dimension_numbers = #tpu.dot_dimension_numbers<[1], [0], [0], [1], [0, 0, 1, 1], [], []>} : vector<16x16xbf16>, vector<16x32xbf16>, vector<16x32xf32> -> vector<16x32xf32>
    %84 = tpu.concatenate %29, %47, %65, %83 in 1 : vector<16x32xf32>, vector<16x32xf32>, vector<16x32xf32>, vector<16x32xf32> -> vector<16x128xf32>
    %85 = arith.truncf %84 : vector<16x128xf32> to vector<16x128xbf16>
    %c0_24 = arith.constant 0 : index
    %c0_25 = arith.constant 0 : index
    %c0_26 = arith.constant 0 : index
    %86 = vector.load %arg5[%c0_24, %c0_25, %c0_26] : memref<1x128x128xbf16, #tpu.memory_space<vmem>>, vector<1x128x128xbf16>
    %87 = vector.shape_cast %86 : vector<1x128x128xbf16> to vector<128x128xbf16>
    %cst_27 = arith.constant dense<0.000000e+00> : vector<16x128xf32>
    %88 = tpu.matmul %85, %87, %cst_27 {dimension_numbers = #tpu.dot_dimension_numbers<[1], [0], [0], [1], [0, 0, 1, 1], [], []>} : vector<16x128xbf16>, vector<128x128xbf16>, vector<16x128xf32> -> vector<16x128xf32>
    %c0_28 = arith.constant 0 : index
    %c0_29 = arith.constant 0 : index
    %c0_30 = arith.constant 0 : index
    %89 = vector.load %arg6[%c0_28, %c0_29, %c0_30] : memref<1x1x128xf32, #tpu.memory_space<vmem>>, vector<1x1x128xf32>
    %90 = vector.shape_cast %89 : vector<1x1x128xf32> to vector<1x128xf32>
    %91 = vector.broadcast %90 : vector<1x128xf32> to vector<16x128xf32>
    %92 = arith.addf %88, %91 : vector<16x128xf32>
    %c0_31 = arith.constant 0 : index
    %c0_32 = arith.constant 0 : index
    %93 = vector.load %arg9[%c0_31, %c0_32] : memref<16x16xbf16, #tpu.memory_space<vmem>>, vector<16x16xbf16>
    %94 = arith.addf %3, %92 : vector<16x128xf32>
    %95 = arith.truncf %94 : vector<16x128xf32> to vector<16x128xbf16>
    %cst_33 = arith.constant dense<0.000000e+00> : vector<16x128xf32>
    %96 = tpu.matmul %93, %95, %cst_33 {dimension_numbers = #tpu.dot_dimension_numbers<[1], [0], [0], [1], [0, 0, 1, 1], [], []>} : vector<16x16xbf16>, vector<16x128xbf16>, vector<16x128xf32> -> vector<16x128xf32>
    %97 = arith.truncf %96 : vector<16x128xf32> to vector<16x128xbf16>
    %c0_34 = arith.constant 0 : index
    %c0_35 = arith.constant 0 : index
    %c0_36 = arith.constant 0 : index
    %98 = vector.load %arg7[%c0_34, %c0_35, %c0_36] : memref<1x128x256xbf16, #tpu.memory_space<vmem>>, vector<1x128x256xbf16>
    %99 = vector.shape_cast %98 : vector<1x128x256xbf16> to vector<128x256xbf16>
    %cst_37 = arith.constant dense<0.000000e+00> : vector<16x256xf32>
    %100 = tpu.matmul %97, %99, %cst_37 {dimension_numbers = #tpu.dot_dimension_numbers<[1], [0], [0], [1], [0, 0, 1, 1], [], []>} : vector<16x128xbf16>, vector<128x256xbf16>, vector<16x256xf32> -> vector<16x256xf32>
    %cst_38 = arith.constant 0.000000e+00 : f32
    %101 = vector.broadcast %cst_38 : f32 to vector<16x256xf32>
    %102 = arith.maximumf %100, %101 : vector<16x256xf32>
    %103 = arith.truncf %102 : vector<16x256xf32> to vector<16x256xbf16>
    %c0_39 = arith.constant 0 : index
    %c0_40 = arith.constant 0 : index
    %c0_41 = arith.constant 0 : index
    %104 = vector.load %arg8[%c0_39, %c0_40, %c0_41] : memref<1x256x128xbf16, #tpu.memory_space<vmem>>, vector<1x256x128xbf16>
    %105 = vector.shape_cast %104 : vector<1x256x128xbf16> to vector<256x128xbf16>
    %cst_42 = arith.constant dense<0.000000e+00> : vector<16x128xf32>
    %106 = tpu.matmul %103, %105, %cst_42 {dimension_numbers = #tpu.dot_dimension_numbers<[1], [0], [0], [1], [0, 0, 1, 1], [], []>} : vector<16x256xbf16>, vector<256x128xbf16>, vector<16x128xf32> -> vector<16x128xf32>
    %107 = arith.addf %96, %106 : vector<16x128xf32>
    %108 = arith.truncf %107 : vector<16x128xf32> to vector<16x128xbf16>
    %cst_43 = arith.constant dense<0.000000e+00> : vector<16x128xf32>
    %109 = tpu.matmul %93, %108, %cst_43 {dimension_numbers = #tpu.dot_dimension_numbers<[1], [0], [0], [1], [0, 0, 1, 1], [], []>} : vector<16x16xbf16>, vector<16x128xbf16>, vector<16x128xf32> -> vector<16x128xf32>
    %c0_44 = arith.constant 0 : index
    %c0_45 = arith.constant 0 : index
    %110 = vector.load %arg13[%c0_44, %c0_45] : memref<16x128xf32, #tpu.memory_space<vmem>>, vector<16x128xf32>
    tpu.vector_store %arg13[%c0_44, %c0_45], %109 {strides = array<i32>} : memref<16x128xf32, #tpu.memory_space<vmem>>, vector<16x128xf32>,
    %c1_i32 = arith.constant 1 : i32
    %111 = arith.cmpi eq, %arg1, %c1_i32 : i32
    %112 = arith.extui %111 : i1 to i32
    %c0_i32_46 = arith.constant 0 : i32
    %113 = arith.cmpi ne, %112, %c0_i32_46 : i32
    scf.if %113 {
      %cst_47 = arith.constant dense<0.000000e+00> : vector<16xf32>
      %114 = vector.multi_reduction <add>, %109, %cst_47 [1] : vector<16x128xf32> to vector<16xf32>
      %115 = vector.shape_cast %114 : vector<16xf32> to vector<16x1xf32>
      %cst_48 = arith.constant 1.280000e+02 : f32
      %116 = vector.broadcast %cst_48 : f32 to vector<16x1xf32>
      %117 = arith.divf %115, %116 : vector<16x1xf32>
      %118 = vector.broadcast %117 : vector<16x1xf32> to vector<16x128xf32>
      %119 = arith.subf %109, %118 : vector<16x128xf32>
      %120 = arith.mulf %119, %119 : vector<16x128xf32>
      %cst_49 = arith.constant dense<0.000000e+00> : vector<16xf32>
      %121 = vector.multi_reduction <add>, %120, %cst_49 [1] : vector<16x128xf32> to vector<16xf32>
      %122 = vector.shape_cast %121 : vector<16xf32> to vector<16x1xf32>
      %cst_50 = arith.constant 1.280000e+02 : f32
      %123 = vector.broadcast %cst_50 : f32 to vector<16x1xf32>
      %124 = arith.divf %122, %123 : vector<16x1xf32>
      %125 = vector.broadcast %117 : vector<16x1xf32> to vector<16x128xf32>
      %126 = arith.subf %109, %125 : vector<16x128xf32>
      %cst_51 = arith.constant 9.99999974E-6 : f32
      %127 = vector.broadcast %cst_51 : f32 to vector<16x1xf32>
      %128 = arith.addf %124, %127 : vector<16x1xf32>
      %129 = math.rsqrt %128 : vector<16x1xf32>
      %130 = vector.broadcast %129 : vector<16x1xf32> to vector<16x128xf32>
      %131 = arith.mulf %126, %130 : vector<16x128xf32>
      %c0_52 = arith.constant 0 : index
      %c0_53 = arith.constant 0 : index
      %132 = vector.load %arg10[%c0_52, %c0_53] : memref<1x128xf32, #tpu.memory_space<vmem>>, vector<1x128xf32>
      %133 = vector.broadcast %132 : vector<1x128xf32> to vector<16x128xf32>
      %134 = arith.mulf %131, %133 : vector<16x128xf32>
      %c0_54 = arith.constant 0 : index
      %c0_55 = arith.constant 0 : index
      %135 = vector.load %arg11[%c0_54, %c0_55] : memref<1x128xf32, #tpu.memory_space<vmem>>, vector<1x128xf32>
      %136 = vector.broadcast %135 : vector<1x128xf32> to vector<16x128xf32>
      %137 = arith.addf %134, %136 : vector<16x128xf32>
      %cst_56 = arith.constant dense<0.000000e+00> : vector<128xf32>
      %138 = vector.multi_reduction <add>, %137, %cst_56 [0] : vector<16x128xf32> to vector<128xf32>
      %139 = vector.shape_cast %138 : vector<128xf32> to vector<1x128xf32>
      %cst_57 = arith.constant 1.600000e+01 : f32
      %140 = vector.broadcast %cst_57 : f32 to vector<1x128xf32>
      %141 = arith.divf %139, %140 : vector<1x128xf32>
      %142 = vector.broadcast %141 : vector<1x128xf32> to vector<16x128xf32>
      %143 = arith.subf %137, %142 : vector<16x128xf32>
      %c0_58 = arith.constant 0 : index
      %c0_59 = arith.constant 0 : index
      %c0_60 = arith.constant 0 : index
      %144 = vector.load %arg12[%c0_58, %c0_59, %c0_60] : memref<1x16x128xf32, #tpu.memory_space<vmem>>, vector<1x16x128xf32>
      %145 = vector.shape_cast %144 : vector<1x16x128xf32> to vector<16x128xf32>
      %146 = vector.shape_cast %143 : vector<16x128xf32> to vector<1x16x128xf32>
      tpu.vector_store %arg12[%c0_58, %c0_59, %c0_60], %146 {strides = array<i32>} : memref<1x16x128xf32, #tpu.memory_space<vmem>>, vector<1x16x128xf32>,
    } else {
    }
    return
  }
  func.func @transform_0(%arg0: i32, %arg1: i32) -> (i32, i32, i32) {
    %c0_i32 = arith.constant 0 : i32
    %c0_i32_0 = arith.constant 0 : i32
    %c0_i32_1 = arith.constant 0 : i32
    return %arg0, %c0_i32, %c0_i32_0 : i32, i32, i32
  }
  func.func @transform_1(%arg0: i32, %arg1: i32) -> (i32, i32, i32) {
    %c0_i32 = arith.constant 0 : i32
    %c0_i32_0 = arith.constant 0 : i32
    %c0_i32_1 = arith.constant 0 : i32
    return %arg1, %c0_i32, %c0_i32_0 : i32, i32, i32
  }
  func.func @transform_2(%arg0: i32, %arg1: i32) -> (i32, i32, i32) {
    %c0_i32 = arith.constant 0 : i32
    %c0_i32_0 = arith.constant 0 : i32
    %c0_i32_1 = arith.constant 0 : i32
    return %arg1, %c0_i32, %c0_i32_0 : i32, i32, i32
  }
  func.func @transform_3(%arg0: i32, %arg1: i32) -> (i32, i32, i32) {
    %c0_i32 = arith.constant 0 : i32
    %c0_i32_0 = arith.constant 0 : i32
    %c0_i32_1 = arith.constant 0 : i32
    return %arg1, %c0_i32, %c0_i32_0 : i32, i32, i32
  }
  func.func @transform_4(%arg0: i32, %arg1: i32) -> (i32, i32, i32) {
    %c0_i32 = arith.constant 0 : i32
    %c0_i32_0 = arith.constant 0 : i32
    %c0_i32_1 = arith.constant 0 : i32
    return %arg1, %c0_i32, %c0_i32_0 : i32, i32, i32
  }
  func.func @transform_5(%arg0: i32, %arg1: i32) -> (i32, i32, i32) {
    %c0_i32 = arith.constant 0 : i32
    %c0_i32_0 = arith.constant 0 : i32
    %c0_i32_1 = arith.constant 0 : i32
    return %arg1, %c0_i32, %c0_i32_0 : i32, i32, i32
  }
  func.func @transform_6(%arg0: i32, %arg1: i32) -> (i32, i32, i32) {
    %c0_i32 = arith.constant 0 : i32
    %c0_i32_0 = arith.constant 0 : i32
    %c0_i32_1 = arith.constant 0 : i32
    return %arg1, %c0_i32, %c0_i32_0 : i32, i32, i32
  }
  func.func @transform_7(%arg0: i32, %arg1: i32) -> (i32, i32) {
    %c0_i32 = arith.constant 0 : i32
    %c0_i32_0 = arith.constant 0 : i32
    %c0_i32_1 = arith.constant 0 : i32
    return %c0_i32, %c0_i32_0 : i32, i32
  }
  func.func @transform_8(%arg0: i32, %arg1: i32) -> (i32, i32) {
    %c0_i32 = arith.constant 0 : i32
    %c0_i32_0 = arith.constant 0 : i32
    %c0_i32_1 = arith.constant 0 : i32
    return %c0_i32, %c0_i32_0 : i32, i32
  }
  func.func @transform_9(%arg0: i32, %arg1: i32) -> (i32, i32) {
    %c0_i32 = arith.constant 0 : i32
    %c0_i32_0 = arith.constant 0 : i32
    %c0_i32_1 = arith.constant 0 : i32
    return %c0_i32, %c0_i32_0 : i32, i32
  }
  func.func @transform_10(%arg0: i32, %arg1: i32) -> (i32, i32, i32) {
    %c0_i32 = arith.constant 0 : i32
    %c0_i32_0 = arith.constant 0 : i32
    %c0_i32_1 = arith.constant 0 : i32
    return %arg0, %c0_i32, %c0_i32_0 : i32, i32, i32
  }
}

</mosaic_0001>

<llo_original>
// kernel: encoder_forward.1
$region0: #{encoder_forward.1}
  #allocation0 [shape = 'u32[]', space=smem, size = 0x4, offset = 0x4, fixed_abs, tag = 'smem constant byte address 0x4 - core index']
  #allocation1 [shape = 'u32[144,128]{1,0:T(1,128)}', space=vmem, size = 0x12000, scoped, tag = 'internal scratch']
  #allocation2 [shape = 'f32[16,128]{1,0:T(8,128)}', space=vmem, size = 0x2000, scoped, tag = 'scratch operand']
  %s0 = inlined_call_operand.hbm [shape: f32[2,16,128], index: 0, kind: input, shape index: {}]
  %s1 = inlined_call_operand.hbm [shape: bf16[2,128,384], index: 1, kind: input, shape index: {}]
  %s2 = inlined_call_operand.vmem [shape: f32[2,1,384], index: 2, kind: input, shape index: {}]
  %s3 = inlined_call_operand.hbm [shape: bf16[2,128,128], index: 3, kind: input, shape index: {}]
  %s4 = inlined_call_operand.hbm [shape: f32[2,1,128], index: 4, kind: input, shape index: {}]
  %s5 = inlined_call_operand.hbm [shape: bf16[2,128,256], index: 5, kind: input, shape index: {}]
  %s6 = inlined_call_operand.hbm [shape: bf16[2,256,128], index: 6, kind: input, shape index: {}]
  %s7 = inlined_call_operand.vmem [shape: bf16[16,16], index: 7, kind: input, shape index: {}]
  %s8 = inlined_call_operand.vmem [shape: f32[1,128], index: 8, kind: input, shape index: {}]
  %s9 = inlined_call_operand.hbm [shape: f32[1,128], index: 9, kind: input, shape index: {}]
  %s10 = inlined_call_operand.hbm [shape: f32[2,16,128], index: 10, kind: output, shape index: {}]
  %s11 = sld [smem:[#allocation0]]
  $region109: #{encoder_forward.1} parent=0
    _
  %s13 = ssub.s32 1, %s11
  %s14 = scalar_select 0, %s13, %s11
  $region1: #{encoder_forward.1} parent=0
    #allocation3 [shape = 'u8[16384]{0}', space=vmem, size = 0x4000, scoped, tag = 'input window, operand 0']
    #allocation4 [shape = 's32[2]{0}', space=sflag, size = 0x8, scoped, tag = 'scoped memory for encoder_forward.1']
    #allocation5 [shape = 's32[2]{0}', space=sflag, size = 0x8, scoped, tag = 'scoped memory for encoder_forward.1']
    #allocation6 [shape = 'u8[196608]{0}', space=vmem, size = 0x30000, scoped, tag = 'input window, operand 1']
    #allocation7 [shape = 's32[2]{0}', space=sflag, size = 0x8, scoped, tag = 'scoped memory for encoder_forward.1']
    #allocation8 [shape = 'u8[65536]{0}', space=vmem, size = 0x10000, scoped, tag = 'input window, operand 3']
    #allocation9 [shape = 'u8[1024]{0}', space=vmem, size = 0x400, scoped, tag = 'input window, operand 4']
    #allocation10 [shape = 's32[2]{0}', space=sflag, size = 0x8, scoped, tag = 'scoped memory for encoder_forward.1']
    #allocation11 [shape = 'u8[131072]{0}', space=vmem, size = 0x20000, scoped, tag = 'input window, operand 5']
    #allocation12 [shape = 'u8[131072]{0}', space=vmem, size = 0x20000, scoped, tag = 'input window, operand 6']
    #allocation13 [shape = 's32[2]{0}', space=sflag, size = 0x8, scoped, tag = 'scoped memory for encoder_forward.1']
    #allocation14 [shape = 'u8[512]{0}', space=vmem, size = 0x400, scoped, tag = 'input window, operand 9, single buffered']
    #allocation15 [shape = 'u8[16384]{0}', space=vmem, size = 0x4000, scoped, tag = 'output window, operand 0']
    %15 = vsyncpa [#allocation4], 0
    %s16 = scalar_lea.sflag [#allocation4], 1
    %17 = vsyncpa %s16, 0
    %18 = vsyncpa [#allocation7], 0
    %s19 = scalar_lea.sflag [#allocation7], 1
    %20 = vsyncpa %s19, 0
    %21 = vsyncpa [#allocation10], 0
    %s22 = scalar_lea.sflag [#allocation10], 1
    %23 = vsyncpa %s22, 0
    %24 = vsyncpa [#allocation13], 0
    %s25 = scalar_lea.sflag [#allocation13], 1
    %26 = vsyncpa %s25, 0
    %27 = vsyncpa [#allocation5], 0
    %s28 = scalar_lea.sflag [#allocation5], 1
    %29 = vsyncpa %s28, 0
    loop: start=0, step=1, limit=6
    $region2: #{encoder_forward.1} parent=1 // loop_pre_header
      _
    $region3: #{encoder_forward.1} parent=1 // loop_header
      %s31 = sphi 0, %s35
      %p32 = scmp.ge.s32.totalorder %s31, 6
      %s38 = sphi 0, %s50
      %s39 = sphi 0, %s46
      %s40 = sphi 0, %s38
      %s41 = sphi 0, %s39
      %s42 = sphi 0, %s40
      %s43 = sphi 0, %s41
      %s53 = sphi 0, %s55
      %s56 = sphi 0, %s53
      %s57 = sphi 0, %s56
      %s73 = sphi 0, %s57
      %s79 = sphi 0, %s81
      %s82 = sphi 0, %s79
      %s83 = sphi 0, %s82
      %s99 = sphi 0, %s83
      %s105 = sphi 0, %s107
      %s108 = sphi 0, %s105
      %s109 = sphi 0, %s108
      %s125 = sphi 0, %s109
      %s131 = sphi 0, %s133
      %s134 = sphi 0, %s131
      %s135 = sphi 0, %s134
      %s151 = sphi 0, %s135
      %s157 = sphi 0, %s159
      %s160 = sphi 0, %s157
      %s161 = sphi 0, %s160
      %s177 = sphi 0, %s161
      %s183 = sphi 0, %s185
      %s186 = sphi 0, %s183
      %s187 = sphi 0, %s186
      %s203 = sphi 0, %s187
      %s209 = sphi 0, %s211
      %s212 = sphi 0, %s209
      %s213 = sphi 0, %s212
      %s229 = sphi 0, %s213
      %s233 = sphi 0, %s233
      %s235 = sphi 0, %s233
      %s236 = sphi 0, %s235
      %s250 = sphi 0, %s236
      %s254 = sphi 0, %s254
      %s256 = sphi 0, %s254
      %s257 = sphi 0, %s256
      %s271 = sphi 0, %s257
      %s275 = sphi 0, %s275
      %s277 = sphi 0, %s275
      %s278 = sphi 0, %s277
      %s292 = sphi 0, %s278
      %s298 = sphi 0, %s300
      %s301 = sphi 0, %s298
      %s302 = sphi 0, %s301
      %s318 = sphi 0, %s302
    $region4: #{encoder_forward.1} parent=1 // loop_header_branch
      %34 = sbr.rel (%p32) target = $region8
    $region5: #{encoder_forward.1} parent=1 // loop_body
      %s36 = ssub.s32 %s31, 1
      %s37 = ssub.s32 %s31, 2
      %s44 = sadd.s32 1, %s39
      %p45 = scmp.ge.s32.totalorder %s44, 2
      %s46 = scalar_select %p45, 0, %s44
      %s47 = sadd.s32 1, %s38
      %s48 = scalar_select %p45, %s47, %s38
      %p49 = scmp.ge.s32.totalorder %s48, 2
      %s50 = scalar_select %p49, 0, %s48
      %s51 = ssub.s32 %s38, %s50
      %p52 = scmp.eq.s32.totalorder %s51, 0
      %s54 = sadd.s32 %s53, 1
      %s55 = scalar_select %p52, %s53, %s54
      %p58 = pneg %p52
      %p59 = scmp.eq.s32.totalorder %s31, 3
      %p60 = por %p58, %p59
      %p61 = scmp.ne.s32.totalorder %s53, %s56
      %p62 = scmp.eq.s32.totalorder %s31, 0
      %p63 = por %p61, %p62
      %p64 = scmp.ne.s32.totalorder %s53, %s56
      %p65 = scmp.eq.s32.totalorder %s36, 3
      %p66 = por %p64, %p65
      %p67 = scmp.ne.s32.totalorder %s56, %s57
      %p68 = scmp.eq.s32.totalorder %s36, 0
      %p69 = por %p67, %p68
      %p70 = scmp.ne.s32.totalorder %s56, %s57
      %p71 = scmp.eq.s32.totalorder %s37, 3
      %p72 = por %p70, %p71
      %p74 = scmp.ne.s32.totalorder %s57, %s73
      %p75 = scmp.eq.s32.totalorder %s37, 0
      %p76 = por %p74, %p75
      %s77 = ssub.s32 %s39, %s46
      %p78 = scmp.eq.s32.totalorder %s77, 0
      %s80 = sadd.s32 %s79, 1
      %s81 = scalar_select %p78, %s79, %s80
      %p84 = pneg %p78
      %p85 = scmp.eq.s32.totalorder %s31, 3
      %p86 = por %p84, %p85
      %p87 = scmp.ne.s32.totalorder %s79, %s82
      %p88 = scmp.eq.s32.totalorder %s31, 0
      %p89 = por %p87, %p88
      %p90 = scmp.ne.s32.totalorder %s79, %s82
      %p91 = scmp.eq.s32.totalorder %s36, 3
      %p92 = por %p90, %p91
      %p93 = scmp.ne.s32.totalorder %s82, %s83
      %p94 = scmp.eq.s32.totalorder %s36, 0
      %p95 = por %p93, %p94
      %p96 = scmp.ne.s32.totalorder %s82, %s83
      %p97 = scmp.eq.s32.totalorder %s37, 3
      %p98 = por %p96, %p97
      %p100 = scmp.ne.s32.totalorder %s83, %s99
      %p101 = scmp.eq.s32.totalorder %s37, 0
      %p102 = por %p100, %p101
      %s103 = ssub.s32 %s39, %s46
      %p104 = scmp.eq.s32.totalorder %s103, 0
      %s106 = sadd.s32 %s105, 1
      %s107 = scalar_select %p104, %s105, %s106
      %p110 = pneg %p104
      %p111 = scmp.eq.s32.totalorder %s31, 3
      %p112 = por %p110, %p111
      %p113 = scmp.ne.s32.totalorder %s105, %s108
      %p114 = scmp.eq.s32.totalorder %s31, 0
      %p115 = por %p113, %p114
      %p116 = scmp.ne.s32.totalorder %s105, %s108
      %p117 = scmp.eq.s32.totalorder %s36, 3
      %p118 = por %p116, %p117
      %p119 = scmp.ne.s32.totalorder %s108, %s109
      %p120 = scmp.eq.s32.totalorder %s36, 0
      %p121 = por %p119, %p120
      %p122 = scmp.ne.s32.totalorder %s108, %s109
      %p123 = scmp.eq.s32.totalorder %s37, 3
      %p124 = por %p122, %p123
      %p126 = scmp.ne.s32.totalorder %s109, %s125
      %p127 = scmp.eq.s32.totalorder %s37, 0
      %p128 = por %p126, %p127
      %s129 = ssub.s32 %s39, %s46
      %p130 = scmp.eq.s32.totalorder %s129, 0
      %s132 = sadd.s32 %s131, 1
      %s133 = scalar_select %p130, %s131, %s132
      %p136 = pneg %p130
      %p137 = scmp.eq.s32.totalorder %s31, 3
      %p138 = por %p136, %p137
      %p139 = scmp.ne.s32.totalorder %s131, %s134
      %p140 = scmp.eq.s32.totalorder %s31, 0
      %p141 = por %p139, %p140
      %p142 = scmp.ne.s32.totalorder %s131, %s134
      %p143 = scmp.eq.s32.totalorder %s36, 3
      %p144 = por %p142, %p143
      %p145 = scmp.ne.s32.totalorder %s134, %s135
      %p146 = scmp.eq.s32.totalorder %s36, 0
      %p147 = por %p145, %p146
      %p148 = scmp.ne.s32.totalorder %s134, %s135
      %p149 = scmp.eq.s32.totalorder %s37, 3
      %p150 = por %p148, %p149
      %p152 = scmp.ne.s32.totalorder %s135, %s151
      %p153 = scmp.eq.s32.totalorder %s37, 0
      %p154 = por %p152, %p153
      %s155 = ssub.s32 %s39, %s46
      %p156 = scmp.eq.s32.totalorder %s155, 0
      %s158 = sadd.s32 %s157, 1
      %s159 = scalar_select %p156, %s157, %s158
      %p162 = pneg %p156
      %p163 = scmp.eq.s32.totalorder %s31, 3
      %p164 = por %p162, %p163
      %p165 = scmp.ne.s32.totalorder %s157, %s160
      %p166 = scmp.eq.s32.totalorder %s31, 0
      %p167 = por %p165, %p166
      %p168 = scmp.ne.s32.totalorder %s157, %s160
      %p169 = scmp.eq.s32.totalorder %s36, 3
      %p170 = por %p168, %p169
      %p171 = scmp.ne.s32.totalorder %s160, %s161
      %p172 = scmp.eq.s32.totalorder %s36, 0
      %p173 = por %p171, %p172
      %p174 = scmp.ne.s32.totalorder %s160, %s161
      %p175 = scmp.eq.s32.totalorder %s37, 3
      %p176 = por %p174, %p175
      %p178 = scmp.ne.s32.totalorder %s161, %s177
      %p179 = scmp.eq.s32.totalorder %s37, 0
      %p180 = por %p178, %p179
      %s181 = ssub.s32 %s39, %s46
      %p182 = scmp.eq.s32.totalorder %s181, 0
      %s184 = sadd.s32 %s183, 1
      %s185 = scalar_select %p182, %s183, %s184
      %p188 = pneg %p182
      %p189 = scmp.eq.s32.totalorder %s31, 3
      %p190 = por %p188, %p189
      %p191 = scmp.ne.s32.totalorder %s183, %s186
      %p192 = scmp.eq.s32.totalorder %s31, 0
      %p193 = por %p191, %p192
      %p194 = scmp.ne.s32.totalorder %s183, %s186
      %p195 = scmp.eq.s32.totalorder %s36, 3
      %p196 = por %p194, %p195
      %p197 = scmp.ne.s32.totalorder %s186, %s187
      %p198 = scmp.eq.s32.totalorder %s36, 0
      %p199 = por %p197, %p198
      %p200 = scmp.ne.s32.totalorder %s186, %s187
      %p201 = scmp.eq.s32.totalorder %s37, 3
      %p202 = por %p200, %p201
      %p204 = scmp.ne.s32.totalorder %s187, %s203
      %p205 = scmp.eq.s32.totalorder %s37, 0
      %p206 = por %p204, %p205
      %s207 = ssub.s32 %s39, %s46
      %p208 = scmp.eq.s32.totalorder %s207, 0
      %s210 = sadd.s32 %s209, 1
      %s211 = scalar_select %p208, %s209, %s210
      %p214 = pneg %p208
      %p215 = scmp.eq.s32.totalorder %s31, 3
      %p216 = por %p214, %p215
      %p217 = scmp.ne.s32.totalorder %s209, %s212
      %p218 = scmp.eq.s32.totalorder %s31, 0
      %p219 = por %p217, %p218
      %p220 = scmp.ne.s32.totalorder %s209, %s212
      %p221 = scmp.eq.s32.totalorder %s36, 3
      %p222 = por %p220, %p221
      %p223 = scmp.ne.s32.totalorder %s212, %s213
      %p224 = scmp.eq.s32.totalorder %s36, 0
      %p225 = por %p223, %p224
      %p226 = scmp.ne.s32.totalorder %s212, %s213
      %p227 = scmp.eq.s32.totalorder %s37, 3
      %p228 = por %p226, %p227
      %p230 = scmp.ne.s32.totalorder %s213, %s229
      %p231 = scmp.eq.s32.totalorder %s37, 0
      %p232 = por %p230, %p231
      %s234 = sadd.s32 %s233, 1
      %p237 = scmp.eq.s32.totalorder %s31, 3
      %p238 = scmp.ne.s32.totalorder %s233, %s235
      %p239 = scmp.eq.s32.totalorder %s31, 0
      %p240 = por %p238, %p239
      %p241 = scmp.ne.s32.totalorder %s233, %s235
      %p242 = scmp.eq.s32.totalorder %s36, 3
      %p243 = por %p241, %p242
      %p244 = scmp.ne.s32.totalorder %s235, %s236
      %p245 = scmp.eq.s32.totalorder %s36, 0
      %p246 = por %p244, %p245
      %p247 = scmp.ne.s32.totalorder %s235, %s236
      %p248 = scmp.eq.s32.totalorder %s37, 3
      %p249 = por %p247, %p248
      %p251 = scmp.ne.s32.totalorder %s236, %s250
      %p252 = scmp.eq.s32.totalorder %s37, 0
      %p253 = por %p251, %p252
      %s255 = sadd.s32 %s254, 1
      %p258 = scmp.eq.s32.totalorder %s31, 3
      %p259 = scmp.ne.s32.totalorder %s254, %s256
      %p260 = scmp.eq.s32.totalorder %s31, 0
      %p261 = por %p259, %p260
      %p262 = scmp.ne.s32.totalorder %s254, %s256
      %p263 = scmp.eq.s32.totalorder %s36, 3
      %p264 = por %p262, %p263
      %p265 = scmp.ne.s32.totalorder %s256, %s257
      %p266 = scmp.eq.s32.totalorder %s36, 0
      %p267 = por %p265, %p266
      %p268 = scmp.ne.s32.totalorder %s256, %s257
      %p269 = scmp.eq.s32.totalorder %s37, 3
      %p270 = por %p268, %p269
      %p272 = scmp.ne.s32.totalorder %s257, %s271
      %p273 = scmp.eq.s32.totalorder %s37, 0
      %p274 = por %p272, %p273
      %s276 = sadd.s32 %s275, 1
      %p279 = scmp.eq.s32.totalorder %s31, 3
      %p280 = scmp.ne.s32.totalorder %s275, %s277
      %p281 = scmp.eq.s32.totalorder %s31, 0
      %p282 = por %p280, %p281
      %p283 = scmp.ne.s32.totalorder %s275, %s277
      %p284 = scmp.eq.s32.totalorder %s36, 3
      %p285 = por %p283, %p284
      %p286 = scmp.ne.s32.totalorder %s277, %s278
      %p287 = scmp.eq.s32.totalorder %s36, 0
      %p288 = por %p286, %p287
      %p289 = scmp.ne.s32.totalorder %s277, %s278
      %p290 = scmp.eq.s32.totalorder %s37, 3
      %p291 = por %p289, %p290
      %p293 = scmp.ne.s32.totalorder %s278, %s292
      %p294 = scmp.eq.s32.totalorder %s37, 0
      %p295 = por %p293, %p294
      %s296 = ssub.s32 %s38, %s50
      %p297 = scmp.eq.s32.totalorder %s296, 0
      %s299 = sadd.s32 %s298, 1
      %s300 = scalar_select %p297, %s298, %s299
      %p303 = pneg %p297
      %p304 = scmp.eq.s32.totalorder %s31, 3
      %p305 = por %p303, %p304
      %p306 = scmp.ne.s32.totalorder %s298, %s301
      %p307 = scmp.eq.s32.totalorder %s31, 0
      %p308 = por %p306, %p307
      %p309 = scmp.ne.s32.totalorder %s298, %s301
      %p310 = scmp.eq.s32.totalorder %s36, 3
      %p311 = por %p309, %p310
      %p312 = scmp.ne.s32.totalorder %s301, %s302
      %p313 = scmp.eq.s32.totalorder %s36, 0
      %p314 = por %p312, %p313
      %p315 = scmp.ne.s32.totalorder %s301, %s302
      %p316 = scmp.eq.s32.totalorder %s37, 3
      %p317 = por %p315, %p316
      %p319 = scmp.ne.s32.totalorder %s302, %s318
      %p320 = scmp.eq.s32.totalorder %s37, 0
      %p321 = por %p319, %p320
      %p322 = scmp.le.s32.totalorder 1, %s31
      %p323 = scmp.lt.s32.totalorder %s31, 5
      %p324 = pnand %p322, %p323
      %p325 = pneg %p324
      // Predicated region
      $region9: #{encoder_forward.1} parent=5 // pred_check
        _
      $region10: #{encoder_forward.1} parent=5 // pred_check_branch
        %327 = sbr.rel (%p324) target = $region12
      $region11: #{encoder_forward.1} parent=5 // pred_region
        %s328 = ssub.s32 %s31, 1
        // Predicated region
        $region13: #{encoder_forward.1} parent=11 // pred_check
          %p329 = pneg %p246
        $region14: #{encoder_forward.1} parent=11 // pred_check_branch
          %331 = sbr.rel (%p329) target = $region16
        $region15: #{encoder_forward.1} parent=11 // pred_region
          _
        $region16: #{encoder_forward.1} parent=11 // pred_fallthru
          _
        // Predicated region
        $region17: #{encoder_forward.1} parent=11 // pred_check
          %p332 = pneg %p267
        $region18: #{encoder_forward.1} parent=11 // pred_check_branch
          %334 = sbr.rel (%p332) target = $region20
        $region19: #{encoder_forward.1} parent=11 // pred_region
          _
        $region20: #{encoder_forward.1} parent=11 // pred_fallthru
          _
        // Predicated region
        $region21: #{encoder_forward.1} parent=11 // pred_check
          %p335 = pneg %p288
        $region22: #{encoder_forward.1} parent=11 // pred_check_branch
          %337 = sbr.rel (%p335) target = $region24
        $region23: #{encoder_forward.1} parent=11 // pred_region
          %s339 = ssub.s32 16, 16
          %340 = vsyncadd [#allocation13], %s339
          %s342 = sshll.u32 [#allocation14], 4
          %s343 = int_to_ptr.vmem [resolvable:$true] %s342
          %345 = dma.hbm_to_vmem [thread:$0]  %s9, 16, %s343, [#allocation13]
        $region24: #{encoder_forward.1} parent=11 // pred_fallthru
          _
      $region12: #{encoder_forward.1} parent=5 // pred_fallthru
        _
      %p346 = scmp.lt.s32.totalorder %s31, 4
      // Predicated region
      $region25: #{encoder_forward.1} parent=5 // pred_check
        %p347 = pneg %p346
      $region26: #{encoder_forward.1} parent=5 // pred_check_branch
        %349 = sbr.rel (%p347) target = $region28
      $region27: #{encoder_forward.1} parent=5 // pred_region
        // Predicated region
        $region29: #{encoder_forward.1} parent=27 // pred_check
          %p350 = pneg %p63
        $region30: #{encoder_forward.1} parent=27 // pred_check_branch
          %352 = sbr.rel (%p350) target = $region32
        $region31: #{encoder_forward.1} parent=27 // pred_region
          %s353 = sand.u32 %s53, 1
          %s354 = scalar_lea.sflag [#allocation4], %s353
          %s355 = sand.u32 %s53, 1
          %s356 = smul.addr %s355, 16
          %s357 = scalar_lea.vmem [#allocation3], %s356
          %s359 = ssub.s32 256, 256
          %360 = vsyncadd %s354, %s359
          %s361 = smul.addr %s38, 2
          %s362 = smul.addr %s361, 128
          %s363 = scalar_lea.hbm %s0, %s362
          %s364 = sshll.u32 %s357, 4
          %s365 = int_to_ptr.vmem [resolvable:$true] %s364
          %370 = dma.hbm_to_vmem [thread:$0]  %s363, 256, %s365, %s354, 128, 128, 8
        $region32: #{encoder_forward.1} parent=27 // pred_fallthru
          _
        // Predicated region
        $region33: #{encoder_forward.1} parent=27 // pred_check
          %p371 = pneg %p89
        $region34: #{encoder_forward.1} parent=27 // pred_check_branch
          %373 = sbr.rel (%p371) target = $region36
        $region35: #{encoder_forward.1} parent=27 // pred_region
          %s374 = sand.u32 %s31, 1
          %s375 = scalar_lea.sflag [#allocation7], %s374
          %s376 = sand.u32 %s79, 1
          %s377 = smul.addr %s376, 192
          %s378 = scalar_lea.vmem [#allocation6], %s377
          %s380 = ssub.s32 3072, 3072
          %381 = vsyncadd %s375, %s380
          %s382 = smul.addr %s39, 48
          %s383 = smul.addr %s382, 64
          %s384 = scalar_lea.hbm %s1, %s383
          %s385 = sshll.u32 %s378, 4
          %s386 = int_to_ptr.vmem [resolvable:$true] %s385
          %391 = dma.hbm_to_vmem [thread:$0]  %s384, 3072, %s386, %s375, 192, 192, 12
        $region36: #{encoder_forward.1} parent=27 // pred_fallthru
          _
        // Predicated region
        $region37: #{encoder_forward.1} parent=27 // pred_check
          %p392 = pneg %p115
        $region38: #{encoder_forward.1} parent=27 // pred_check_branch
          %394 = sbr.rel (%p392) target = $region40
        $region39: #{encoder_forward.1} parent=27 // pred_region
          %p395 = scmp.lt.s32.totalorder %s39, 1
          %s396 = scalar_select %p395, %s39, 1
          %s397 = smul.addr %s396, 3
          %s398 = scalar_lea.vmem %s2, %s397
        $region40: #{encoder_forward.1} parent=27 // pred_fallthru
          _
        // Predicated region
        $region41: #{encoder_forward.1} parent=27 // pred_check
          %p399 = pneg %p141
        $region42: #{encoder_forward.1} parent=27 // pred_check_branch
          %401 = sbr.rel (%p399) target = $region44
        $region43: #{encoder_forward.1} parent=27 // pred_region
          %s402 = sand.u32 %s31, 1
          %s403 = scalar_lea.sflag [#allocation7], %s402
          %s404 = sand.u32 %s131, 1
          %s405 = smul.addr %s404, 64
          %s406 = scalar_lea.vmem [#allocation8], %s405
          %s408 = ssub.s32 1024, 1024
          %409 = vsyncadd %s403, %s408
          %s410 = smul.addr %s39, 16
          %s411 = smul.addr %s410, 64
          %s412 = scalar_lea.hbm %s3, %s411
          %s413 = sshll.u32 %s406, 4
          %s414 = int_to_ptr.vmem [resolvable:$true] %s413
          %419 = dma.hbm_to_vmem [thread:$0]  %s412, 1024, %s414, %s403, 64, 64, 4
        $region44: #{encoder_forward.1} parent=27 // pred_fallthru
          _
        // Predicated region
        $region45: #{encoder_forward.1} parent=27 // pred_check
          %p420 = pneg %p167
        $region46: #{encoder_forward.1} parent=27 // pred_check_branch
          %422 = sbr.rel (%p420) target = $region48
        $region47: #{encoder_forward.1} parent=27 // pred_region
          %s423 = sand.u32 %s31, 1
          %s424 = scalar_lea.sflag [#allocation10], %s423
          %s425 = sand.u32 %s157, 1
          %s426 = scalar_lea.vmem [#allocation9], %s425
          %s428 = ssub.s32 16, 16
          %429 = vsyncadd %s424, %s428
          %s430 = smul.addr %s39, 16
          %s431 = scalar_lea.hbm %s4, %s430
          %s433 = sshll.u32 %s426, 4
          %s434 = int_to_ptr.vmem [resolvable:$true] %s433
          %436 = dma.hbm_to_vmem [thread:$0]  %s431, 16, %s434, %s424
        $region48: #{encoder_forward.1} parent=27 // pred_fallthru
          _
        // Predicated region
        $region49: #{encoder_forward.1} parent=27 // pred_check
          %p437 = pneg %p193
        $region50: #{encoder_forward.1} parent=27 // pred_check_branch
          %439 = sbr.rel (%p437) target = $region52
        $region51: #{encoder_forward.1} parent=27 // pred_region
          %s440 = sand.u32 %s31, 1
          %s441 = scalar_lea.sflag [#allocation10], %s440
          %s442 = sand.u32 %s183, 1
          %s443 = smul.addr %s442, 128
          %s444 = scalar_lea.vmem [#allocation11], %s443
          %s446 = ssub.s32 2048, 2048
          %447 = vsyncadd %s441, %s446
          %s448 = smul.addr %s39, 32
          %s449 = smul.addr %s448, 64
          %s450 = scalar_lea.hbm %s5, %s449
          %s451 = sshll.u32 %s444, 4
          %s452 = int_to_ptr.vmem [resolvable:$true] %s451
          %457 = dma.hbm_to_vmem [thread:$0]  %s450, 2048, %s452, %s441, 128, 128, 8
        $region52: #{encoder_forward.1} parent=27 // pred_fallthru
          _
        // Predicated region
        $region53: #{encoder_forward.1} parent=27 // pred_check
          %p458 = pneg %p219
        $region54: #{encoder_forward.1} parent=27 // pred_check_branch
          %460 = sbr.rel (%p458) target = $region56
        $region55: #{encoder_forward.1} parent=27 // pred_region
          %s461 = sand.u32 %s31, 1
          %s462 = scalar_lea.sflag [#allocation13], %s461
          %s463 = sand.u32 %s209, 1
          %s464 = smul.addr %s463, 128
          %s465 = scalar_lea.vmem [#allocation12], %s464
          %s467 = ssub.s32 2048, 2048
          %468 = vsyncadd %s462, %s467
          %s469 = smul.addr %s39, 32
          %s470 = smul.addr %s469, 64
          %s471 = scalar_lea.hbm %s6, %s470
          %s472 = sshll.u32 %s465, 4
          %s473 = int_to_ptr.vmem [resolvable:$true] %s472
          %478 = dma.hbm_to_vmem [thread:$0]  %s471, 2048, %s473, %s462, 64, 64, 4
        $region56: #{encoder_forward.1} parent=27 // pred_fallthru
          _
      $region28: #{encoder_forward.1} parent=5 // pred_fallthru
        _
      %p479 = scmp.le.s32.totalorder 1, %s31
      %p480 = scmp.lt.s32.totalorder %s31, 5
      %p481 = pnand %p479, %p480
      %p482 = pneg %p481
      // Predicated region
      $region57: #{encoder_forward.1} parent=5 // pred_check
        _
      $region58: #{encoder_forward.1} parent=5 // pred_check_branch
        %484 = sbr.rel (%p481) target = $region60
      $region59: #{encoder_forward.1} parent=5 // pred_region
        %s485 = ssub.s32 %s31, 1
        %s486 = sand.u32 %s56, 1
        %s487 = scalar_lea.sflag [#allocation4], %s486
        %s488 = sand.u32 %s56, 1
        %s489 = smul.addr %s488, 16
        %s490 = scalar_lea.vmem [#allocation3], %s489
        // Predicated region
        $region61: #{encoder_forward.1} parent=59 // pred_check
          %p491 = pneg %p69
        $region62: #{encoder_forward.1} parent=59 // pred_check_branch
          %493 = sbr.rel (%p491) target = $region64
        $region63: #{encoder_forward.1} parent=59 // pred_region
          %494 = dma.done %s487, 256
        $region64: #{encoder_forward.1} parent=59 // pred_fallthru
          _
        %s495 = sand.u32 %s36, 1
        %s496 = scalar_lea.sflag [#allocation7], %s495
        %s497 = sand.u32 %s82, 1
        %s498 = smul.addr %s497, 192
        %s499 = scalar_lea.vmem [#allocation6], %s498
        // Predicated region
        $region65: #{encoder_forward.1} parent=59 // pred_check
          %p500 = pneg %p95
        $region66: #{encoder_forward.1} parent=59 // pred_check_branch
          %502 = sbr.rel (%p500) target = $region68
        $region67: #{encoder_forward.1} parent=59 // pred_region
          %503 = dma.done %s496, 3072
        $region68: #{encoder_forward.1} parent=59 // pred_fallthru
          _
        %s504 = sand.u32 %s36, 1
        %s505 = scalar_lea.sflag [#allocation7], %s504
        %s506 = sand.u32 %s134, 1
        %s507 = smul.addr %s506, 64
        %s508 = scalar_lea.vmem [#allocation8], %s507
        // Predicated region
        $region69: #{encoder_forward.1} parent=59 // pred_check
          %p509 = pneg %p147
        $region70: #{encoder_forward.1} parent=59 // pred_check_branch
          %511 = sbr.rel (%p509) target = $region72
        $region71: #{encoder_forward.1} parent=59 // pred_region
          %512 = dma.done %s505, 1024
        $region72: #{encoder_forward.1} parent=59 // pred_fallthru
          _
        %s513 = sand.u32 %s36, 1
        %s514 = scalar_lea.sflag [#allocation10], %s513
        %s515 = sand.u32 %s160, 1
        %s516 = scalar_lea.vmem [#allocation9], %s515
        // Predicated region
        $region73: #{encoder_forward.1} parent=59 // pred_check
          %p517 = pneg %p173
        $region74: #{encoder_forward.1} parent=59 // pred_check_branch
          %519 = sbr.rel (%p517) target = $region76
        $region75: #{encoder_forward.1} parent=59 // pred_region
          %520 = dma.done %s514, 16
        $region76: #{encoder_forward.1} parent=59 // pred_fallthru
          _
        %s521 = sand.u32 %s36, 1
        %s522 = scalar_lea.sflag [#allocation10], %s521
        %s523 = sand.u32 %s186, 1
        %s524 = smul.addr %s523, 128
        %s525 = scalar_lea.vmem [#allocation11], %s524
        // Predicated region
        $region77: #{encoder_forward.1} parent=59 // pred_check
          %p526 = pneg %p199
        $region78: #{encoder_forward.1} parent=59 // pred_check_branch
          %528 = sbr.rel (%p526) target = $region80
        $region79: #{encoder_forward.1} parent=59 // pred_region
          %529 = dma.done %s522, 2048
        $region80: #{encoder_forward.1} parent=59 // pred_fallthru
          _
        %s530 = sand.u32 %s36, 1
        %s531 = scalar_lea.sflag [#allocation13], %s530
        %s532 = sand.u32 %s212, 1
        %s533 = smul.addr %s532, 128
        %s534 = scalar_lea.vmem [#allocation12], %s533
        // Predicated region
        $region81: #{encoder_forward.1} parent=59 // pred_check
          %p535 = pneg %p225
        $region82: #{encoder_forward.1} parent=59 // pred_check_branch
          %537 = sbr.rel (%p535) target = $region84
        $region83: #{encoder_forward.1} parent=59 // pred_region
          %538 = dma.done %s531, 2048
        $region84: #{encoder_forward.1} parent=59 // pred_fallthru
          _
        // Predicated region
        $region85: #{encoder_forward.1} parent=59 // pred_check
          %p539 = pneg %p288
        $region86: #{encoder_forward.1} parent=59 // pred_check_branch
          %541 = sbr.rel (%p539) target = $region88
        $region87: #{encoder_forward.1} parent=59 // pred_region
          %542 = dma.done [#allocation13], 16
        $region88: #{encoder_forward.1} parent=59 // pred_fallthru
          _
        %s543 = sand.u32 %s56, 1
        %s544 = scalar_lea.sflag [#allocation4], %s543
        %s545 = sand.u32 %s56, 1
        %s546 = smul.addr %s545, 16
        %s547 = scalar_lea.vmem [#allocation3], %s546
        %p548 = pneg %p69
        %p549 = pneg %p66
        %s550 = sand.u32 %s36, 1
        %s551 = scalar_lea.sflag [#allocation7], %s550
        %s552 = sand.u32 %s82, 1
        %s553 = smul.addr %s552, 192
        %s554 = scalar_lea.vmem [#allocation6], %s553
        %p555 = pneg %p95
        %p556 = pneg %p92
        %p557 = scmp.lt.s32.totalorder %s41, 1
        %s558 = scalar_select %p557, %s41, 1
        %s559 = smul.addr %s558, 3
        %s560 = scalar_lea.vmem %s2, %s559
        %p561 = pneg %p121
        %p562 = pneg %p118
        %s563 = sand.u32 %s36, 1
        %s564 = scalar_lea.sflag [#allocation7], %s563
        %s565 = sand.u32 %s134, 1
        %s566 = smul.addr %s565, 64
        %s567 = scalar_lea.vmem [#allocation8], %s566
        %p568 = pneg %p147
        %p569 = pneg %p144
        %s570 = sand.u32 %s36, 1
        %s571 = scalar_lea.sflag [#allocation10], %s570
        %s572 = sand.u32 %s160, 1
        %s573 = scalar_lea.vmem [#allocation9], %s572
        %p574 = pneg %p173
        %p575 = pneg %p170
        %s576 = sand.u32 %s36, 1
        %s577 = scalar_lea.sflag [#allocation10], %s576
        %s578 = sand.u32 %s186, 1
        %s579 = smul.addr %s578, 128
        %s580 = scalar_lea.vmem [#allocation11], %s579
        %p581 = pneg %p199
        %p582 = pneg %p196
        %s583 = sand.u32 %s36, 1
        %s584 = scalar_lea.sflag [#allocation13], %s583
        %s585 = sand.u32 %s212, 1
        %s586 = smul.addr %s585, 128
        %s587 = scalar_lea.vmem [#allocation12], %s586
        %p588 = pneg %p225
        %p589 = pneg %p222
        %p590 = pneg %p246
        %p591 = pneg %p243
        %p592 = pneg %p267
        %p593 = pneg %p264
        %p594 = pneg %p288
        %p595 = pneg %p285
        %p596 = pneg %p314
        %p597 = pneg %p311
        %s598 = sand.u32 %s301, 1
        %s599 = scalar_lea.sflag [#allocation5], %s598
        %s600 = sand.u32 %s301, 1
        %s601 = smul.addr %s600, 16
        %s602 = scalar_lea.vmem [#allocation15], %s601
        %p603 = scmp.lt.s32.totalorder %s41, 1
        %s604 = scalar_select %p603, %s41, 1
        %s605 = smul.addr %s604, 3
        %s606 = scalar_lea.vmem %s2, %s605
        %p608 = scmp.eq.s32.totalorder %s41, 0
        // Predicated region
        $region89: #{encoder_forward.1} parent=59 // pred_check
          %p609 = pneg %p608
        $region90: #{encoder_forward.1} parent=59 // pred_check_branch
          %611 = sbr.rel (%p609) target = $region92
        $region91: #{encoder_forward.1} parent=59 // pred_region
          %v612 = vld [vmem:[%s490] sm:$0xff]
          %v613 = vld [vmem:[%s490 + $0x8] sm:$0xff]
          %614 = vst [vmem:[#allocation2] sm:$0xff] %v612
          %615 = vst [vmem:[#allocation2 + $0x8] sm:$0xff] %v613
        $region92: #{encoder_forward.1} parent=59 // pred_fallthru
          _
        %v616 = vld [vmem:[#allocation2] sm:$0xff]
        %v617 = vld [vmem:[#allocation2 + $0x8] sm:$0xff]
        %v618 = vpack.c.bf16 %v617, %v616
        %v619 = vld [vmem:[%s499] sm:$0xff]
        %v620 = vld [vmem:[%s499 + $0x8] sm:$0xf]
        %v621 = vld [vmem:[%s499 + $0xc] sm:$0xff]
        %v622 = vld [vmem:[%s499 + $0x14] sm:$0xf]
        %v623 = vld [vmem:[%s499 + $0x18] sm:$0xff]
        %v624 = vld [vmem:[%s499 + $0x20] sm:$0xf]
        %v625 = vld [vmem:[%s499 + $0x24] sm:$0xff]
        %v626 = vld [vmem:[%s499 + $0x2c] sm:$0xf]
        %v627 = vld [vmem:[%s499 + $0x30] sm:$0xff]
        %v628 = vld [vmem:[%s499 + $0x38] sm:$0xf]
        %v629 = vld [vmem:[%s499 + $0x3c] sm:$0xff]
        %v630 = vld [vmem:[%s499 + $0x44] sm:$0xf]
        %v631 = vld [vmem:[%s499 + $0x48] sm:$0xff]
        %v632 = vld [vmem:[%s499 + $0x50] sm:$0xf]
        %v633 = vld [vmem:[%s499 + $0x54] sm:$0xff]
        %v634 = vld [vmem:[%s499 + $0x5c] sm:$0xf]
        %v635 = vld [vmem:[%s499 + $0x60] sm:$0xff]
        %v636 = vld [vmem:[%s499 + $0x68] sm:$0xf]
        %v637 = vld [vmem:[%s499 + $0x6c] sm:$0xff]
        %v638 = vld [vmem:[%s499 + $0x74] sm:$0xf]
        %v639 = vld [vmem:[%s499 + $0x78] sm:$0xff]
        %v640 = vld [vmem:[%s499 + $0x80] sm:$0xf]
        %v641 = vld [vmem:[%s499 + $0x84] sm:$0xff]
        %v642 = vld [vmem:[%s499 + $0x8c] sm:$0xf]
        %v643 = vld [vmem:[%s499 + $0x90] sm:$0xff]
        %v644 = vld [vmem:[%s499 + $0x98] sm:$0xf]
        %v645 = vld [vmem:[%s499 + $0x9c] sm:$0xff]
        %v646 = vld [vmem:[%s499 + $0xa4] sm:$0xf]
        %v647 = vld [vmem:[%s499 + $0xa8] sm:$0xff]
        %v648 = vld [vmem:[%s499 + $0xb0] sm:$0xf]
        %v649 = vld [vmem:[%s499 + $0xb4] sm:$0xff]
        %v650 = vld [vmem:[%s499 + $0xbc] sm:$0xf]
        %v651 = vld [vmem:[%s606] sm:$0x7]
        %v653 = vlaneseq
        %v654 = vshrl.u32 %v653, 7
        %v655 = vsub.s32 0, %v654
        %v656 = vrot.slane %v651, %v655
        %v657 = vlaneseq
        %v658 = vshrl.u32 %v657, 7
        %v659 = vsub.s32 1, %v658
        %v660 = vrot.slane %v651, %v659
        %v661 = vlaneseq
        %v662 = vshrl.u32 %v661, 7
        %v663 = vsub.s32 2, %v662
        %v664 = vrot.slane %v651, %v663
        %v700 = vunpack.c.l.b16 %v619
        %v701 = vunpack.c.h.b16 %v619
        %v702 = vunpack.c.l.b16 %v620
        %v703 = vunpack.c.l.b16 %v621
        %v704 = vunpack.c.h.b16 %v621
        %v705 = vunpack.c.l.b16 %v622
        %v706 = vunpack.c.l.b16 %v623
        %v707 = vunpack.c.h.b16 %v623
        %v708 = vunpack.c.l.b16 %v624
        %v709 = vunpack.c.l.b16 %v625
        %v710 = vunpack.c.h.b16 %v625
        %v711 = vunpack.c.l.b16 %v626
        %v712 = vunpack.c.l.b16 %v627
        %v713 = vunpack.c.h.b16 %v627
        %v714 = vunpack.c.l.b16 %v628
        %v715 = vunpack.c.l.b16 %v629
        %v716 = vunpack.c.h.b16 %v629
        %v717 = vunpack.c.l.b16 %v630
        %v718 = vunpack.c.l.b16 %v631
        %v719 = vunpack.c.h.b16 %v631
        %v720 = vunpack.c.l.b16 %v632
        %v721 = vunpack.c.l.b16 %v633
        %v722 = vunpack.c.h.b16 %v633
        %v723 = vunpack.c.l.b16 %v634
        %v724 = vunpack.c.l.b16 %v635
        %v725 = vunpack.c.h.b16 %v635
        %v726 = vunpack.c.l.b16 %v636
        %v727 = vunpack.c.l.b16 %v637
        %v728 = vunpack.c.h.b16 %v637
        %v729 = vunpack.c.l.b16 %v638
        %v730 = vunpack.c.l.b16 %v639
        %v731 = vunpack.c.h.b16 %v639
        %v732 = vunpack.c.l.b16 %v640
        %v733 = vunpack.c.l.b16 %v641
        %v734 = vunpack.c.h.b16 %v641
        %v735 = vunpack.c.l.b16 %v642
        %v736 = vunpack.c.l.b16 %v643
        %v737 = vunpack.c.h.b16 %v643
        %v738 = vunpack.c.l.b16 %v644
        %v739 = vunpack.c.l.b16 %v645
        %v740 = vunpack.c.h.b16 %v645
        %v741 = vunpack.c.l.b16 %v646
        %v742 = vunpack.c.l.b16 %v647
        %v743 = vunpack.c.h.b16 %v647
        %v744 = vunpack.c.l.b16 %v648
        %v745 = vunpack.c.l.b16 %v649
        %v746 = vunpack.c.h.b16 %v649
        %v747 = vunpack.c.l.b16 %v650
        %v748 = vpack.c.b16 %v703, %v700
        %v749 = vpack.c.b16 %v704, %v701
        %v750 = vpack.c.b16 %v705, %v702
        %v751 = vpack.c.b16 %v709, %v706
        %v752 = vpack.c.b16 %v710, %v707
        %v753 = vpack.c.b16 %v711, %v708
        %v754 = vpack.c.b16 %v715, %v712
        %v755 = vpack.c.b16 %v716, %v713
        %v756 = vpack.c.b16 %v717, %v714
        %v757 = vpack.c.b16 %v721, %v718
        %v758 = vpack.c.b16 %v722, %v719
        %v759 = vpack.c.b16 %v723, %v720
        %v760 = vpack.c.b16 %v727, %v724
        %v761 = vpack.c.b16 %v728, %v725
        %v762 = vpack.c.b16 %v729, %v726
        %v763 = vpack.c.b16 %v733, %v730
        %v764 = vpack.c.b16 %v734, %v731
        %v765 = vpack.c.b16 %v735, %v732
        %v766 = vpack.c.b16 %v739, %v736
        %v767 = vpack.c.b16 %v740, %v737
        %v768 = vpack.c.b16 %v741, %v738
        %v769 = vpack.c.b16 %v745, %v742
        %v770 = vpack.c.b16 %v746, %v743
        %v771 = vpack.c.b16 %v747, %v744
        %796 = vmatprep.subr.bf16.mxu0 %v749
        %797 = vmatpush1.bf16.msra.mxu0 %v748
        %798 = vmatprep.subr.bf16.mxu0 %v752
        %799 = vmatpush1.bf16.msra.mxu0 %v751
        %800 = vmatprep.subr.bf16.mxu0 %v755
        %801 = vmatpush1.bf16.msra.mxu0 %v754
        %802 = vmatprep.subr.bf16.mxu0 %v758
        %803 = vmatpush1.bf16.msra.mxu0 %v757
        %804 = vmatprep.subr.bf16.mxu0 %v761
        %805 = vmatpush1.bf16.msra.mxu0 %v760
        %806 = vmatprep.subr.bf16.mxu0 %v764
        %807 = vmatpush1.bf16.msra.mxu0 %v763
        %808 = vmatprep.subr.bf16.mxu0 %v767
        %809 = vmatpush1.bf16.msra.mxu0 %v766
        %810 = vmatprep.subr.bf16.mxu0 %v770
        %811 = vmatpush1.bf16.msra.mxu0 %v769
        %812 = vmatprep.subr.bf16.mxu0 0
        %813 = vmatpush1.bf16.msra.mxu0 0
        %814 = vmatprep.subr.bf16.mxu0 0
        %815 = vmatpush1.bf16.msra.mxu0 0
        %816 = vmatprep.subr.bf16.mxu0 0
        %817 = vmatpush1.bf16.msra.mxu0 0
        %818 = vmatprep.subr.bf16.mxu0 0
        %819 = vmatpush1.bf16.msra.mxu0 0
        %820 = vmatprep.subr.bf16.mxu0 0
        %821 = vmatpush1.bf16.msra.mxu0 0
        %822 = vmatprep.subr.bf16.mxu0 0
        %823 = vmatpush1.bf16.msra.mxu0 0
        %824 = vmatprep.subr.bf16.mxu0 0
        %825 = vmatpush1.bf16.msra.mxu0 0
        %826 = vmatprep.subr.bf16.mxu0 0
        %827 = vmatpush1.bf16.msra.mxu0 0
        %828 = vmatprep.mubr.bf16.mxu0 0
        %829 = vmatmul.mubr.bf16.gmra.mrb[0].mxu0 %v618
        %v830 = vpop.f32.mrb[0].mxu0
        %v831 = vadd.f32 %v656, %v830
        %v832 = vpop.f32.mrb[0].mxu0
        %v833 = vadd.f32 %v660, %v832
        %v834 = vpop.f32.mrb[0].mxu0
        %v835 = vadd.f32 %v656, %v834
        %v836 = vpop.f32.mrb[0].mxu0
        %v837 = vadd.f32 %v660, %v836
        %838 = vdwg.mxu0
        %839 = vmatprep.subr.bf16.mxu0 0
        %840 = vmatpush1.bf16.msra.mxu0 %v750
        %841 = vmatprep.subr.bf16.mxu0 0
        %842 = vmatpush1.bf16.msra.mxu0 %v753
        %843 = vmatprep.subr.bf16.mxu0 0
        %844 = vmatpush1.bf16.msra.mxu0 %v756
        %845 = vmatprep.subr.bf16.mxu0 0
        %846 = vmatpush1.bf16.msra.mxu0 %v759
        %847 = vmatprep.subr.bf16.mxu0 0
        %848 = vmatpush1.bf16.msra.mxu0 %v762
        %849 = vmatprep.subr.bf16.mxu0 0
        %850 = vmatpush1.bf16.msra.mxu0 %v765
        %851 = vmatprep.subr.bf16.mxu0 0
        %852 = vmatpush1.bf16.msra.mxu0 %v768
        %853 = vmatprep.subr.bf16.mxu0 0
        %854 = vmatpush1.bf16.msra.mxu0 %v771
        %855 = vmatprep.subr.bf16.mxu0 0
        %856 = vmatpush1.bf16.msra.mxu0 0
        %857 = vmatprep.subr.bf16.mxu0 0
        %858 = vmatpush1.bf16.msra.mxu0 0
        %859 = vmatprep.subr.bf16.mxu0 0
        %860 = vmatpush1.bf16.msra.mxu0 0
        %861 = vmatprep.subr.bf16.mxu0 0
        %862 = vmatpush1.bf16.msra.mxu0 0
        %863 = vmatprep.subr.bf16.mxu0 0
        %864 = vmatpush1.bf16.msra.mxu0 0
        %865 = vmatprep.subr.bf16.mxu0 0
        %866 = vmatpush1.bf16.msra.mxu0 0
        %867 = vmatprep.subr.bf16.mxu0 0
        %868 = vmatpush1.bf16.msra.mxu0 0
        %869 = vmatprep.subr.bf16.mxu0 0
        %870 = vmatpush1.bf16.msra.mxu0 0
        %871 = vmatprep.mubr.bf16.mxu0 0
        %872 = vmatmul.mubr.bf16.gmra.mrb[0].mxu0 %v618
        %v873 = vpop.f32.mrb[0].mxu0
        %v874 = vadd.f32 %v664, %v873
        %v875 = vpop.f32.mrb[0].mxu0
        %v876 = vpop.f32.mrb[0].mxu0
        %v877 = vadd.f32 %v664, %v876
        %v878 = vpop.f32.mrb[0].mxu0
        %879 = vdwg.mxu0
        %v880 = vpack.c.bf16 %v835, %v831
        %v881 = vpack.c.bf16 %v837, %v833
        %v882 = vpack.c.bf16 %v877, %v874
        %vm883 = vcmask 261120
        %v885 = vsel %vm883, %v880, 0
        %v888 = vsel %vm883, %v881, 0
        %890 = vmatprep.subr.bf16.mxu0 0
        %891 = vmatpush1.bf16.xpose.msra.mxu0 %v888
        %892 = vmatprep.subr.bf16.mxu0 0
        %893 = vmatpush1.bf16.xpose.msra.mxu0 0
        %894 = vmatprep.subr.bf16.mxu0 0
        %895 = vmatpush1.bf16.xpose.msra.mxu0 0
        %896 = vmatprep.subr.bf16.mxu0 0
        %897 = vmatpush1.bf16.xpose.msra.mxu0 0
        %898 = vmatprep.subr.bf16.mxu0 0
        %899 = vmatpush1.bf16.xpose.msra.mxu0 0
        %900 = vmatprep.subr.bf16.mxu0 0
        %901 = vmatpush1.bf16.xpose.msra.mxu0 0
        %902 = vmatprep.subr.bf16.mxu0 0
        %903 = vmatpush1.bf16.xpose.msra.mxu0 0
        %904 = vmatprep.subr.bf16.mxu0 0
        %905 = vmatpush1.bf16.xpose.msra.mxu0 0
        %906 = vmatprep.subr.bf16.mxu0 0
        %907 = vmatpush1.bf16.xpose.msra.mxu0 0
        %908 = vmatprep.subr.bf16.mxu0 0
        %909 = vmatpush1.bf16.xpose.msra.mxu0 0
        %910 = vmatprep.subr.bf16.mxu0 0
        %911 = vmatpush1.bf16.xpose.msra.mxu0 0
        %912 = vmatprep.subr.bf16.mxu0 0
        %913 = vmatpush1.bf16.xpose.msra.mxu0 0
        %914 = vmatprep.subr.bf16.mxu0 0
        %915 = vmatpush1.bf16.xpose.msra.mxu0 0
        %916 = vmatprep.subr.bf16.mxu0 0
        %917 = vmatpush1.bf16.xpose.msra.mxu0 0
        %918 = vmatprep.subr.bf16.mxu0 0
        %919 = vmatpush1.bf16.xpose.msra.mxu0 0
        %920 = vmatprep.subr.bf16.mxu0 0
        %921 = vmatpush1.bf16.xpose.msra.mxu0 0
        %922 = vmatprep.mubr.bf16.mxu0 0
        %923 = vmatmul.mubr.bf16.gmra.mrb[0].mxu0 %v885
        %v924 = vpop.f32.mrb[0].mxu0
        %v925 = vadd.f32 0.0, %v924
        %v926 = vpop.f32.mrb[0].mxu0
        %v927 = vpop.f32.mrb[0].mxu0
        %v928 = vadd.f32 0.0, %v927
        %v929 = vpop.f32.mrb[0].mxu0
        %930 = vdwg.mxu0
        %vm931 = vcmask 130048
        %v932 = vsel %vm931, %v925, -inf
        %933 = vmax.xlane.f32.xlu0 %v932
        %v934 = vpop.xlane.xlu0 %933
        %v935 = vsel %vm931, %v928, -inf
        %936 = vmax.xlane.f32.xlu0 %v935
        %v937 = vpop.xlane.xlu0 %936
        %v938 = vsub.f32 %v925, %v934
        %v939 = vsub.f32 %v928, %v937
        %v940 = vmul.f32 %v938, 1.442695
        %v941 = vpow.pop %v940
        %v942 = vmul.f32 %v939, 1.442695
        %v943 = vpow.pop %v942
        %v944 = vsel %vm931, %v941, 0.0
        %945 = vadd.xlane.f32.xlu0 %v944
        %v946 = vpop.xlane.xlu0 %945
        %v947 = vsel %vm931, %v943, 0.0
        %948 = vadd.xlane.f32.xlu0 %v947
        %v949 = vpop.xlane.xlu0 %948
        %v950 = vrcp.pop %v946
        %v951 = vmul.f32 %v941, %v950
        %v952 = vrcp.pop %v949
        %v953 = vmul.f32 %v943, %v952
        %v954 = vpack.c.bf16 %v953, %v951
        %v956 = vsel %vm931, %v954, 0
        %958 = vmatprep.subr.bf16.mxu0 0
        %959 = vmatpush1.bf16.msra.mxu0 %v882
        %960 = vmatprep.subr.bf16.mxu0 0
        %961 = vmatpush1.bf16.msra.mxu0 0
        %962 = vmatprep.subr.bf16.mxu0 0
        %963 = vmatpush1.bf16.msra.mxu0 0
        %964 = vmatprep.subr.bf16.mxu0 0
        %965 = vmatpush1.bf16.msra.mxu0 0
        %966 = vmatprep.subr.bf16.mxu0 0
        %967 = vmatpush1.bf16.msra.mxu0 0
        %968 = vmatprep.subr.bf16.mxu0 0
        %969 = vmatpush1.bf16.msra.mxu0 0
        %970 = vmatprep.subr.bf16.mxu0 0
        %971 = vmatpush1.bf16.msra.mxu0 0
        %972 = vmatprep.subr.bf16.mxu0 0
        %973 = vmatpush1.bf16.msra.mxu0 0
        %974 = vmatprep.subr.bf16.mxu0 0
        %975 = vmatpush1.bf16.msra.mxu0 0
        %976 = vmatprep.subr.bf16.mxu0 0
        %977 = vmatpush1.bf16.msra.mxu0 0
        %978 = vmatprep.subr.bf16.mxu0 0
        %979 = vmatpush1.bf16.msra.mxu0 0
        %980 = vmatprep.subr.bf16.mxu0 0
        %981 = vmatpush1.bf16.msra.mxu0 0
        %982 = vmatprep.subr.bf16.mxu0 0
        %983 = vmatpush1.bf16.msra.mxu0 0
        %984 = vmatprep.subr.bf16.mxu0 0
        %985 = vmatpush1.bf16.msra.mxu0 0
        %986 = vmatprep.subr.bf16.mxu0 0
        %987 = vmatpush1.bf16.msra.mxu0 0
        %988 = vmatprep.subr.bf16.mxu0 0
        %989 = vmatpush1.bf16.msra.mxu0 0
        %990 = vmatprep.mubr.bf16.mxu0 0
        %991 = vmatmul.mubr.bf16.gmra.mrb[0].mxu0 %v956
        %v992 = vpop.f32.mrb[0].mxu0
        %v993 = vadd.f32 0.0, %v992
        %v994 = vpop.f32.mrb[0].mxu0
        %v995 = vpop.f32.mrb[0].mxu0
        %v996 = vadd.f32 0.0, %v995
        %v997 = vpop.f32.mrb[0].mxu0
        %998 = vdwg.mxu0
        %1000 = vrot.lane.b32.xlu0 %v880, 96
        %v1001 = vpop.permute.xlu0 %1000
        %1003 = vrot.lane.b32.xlu0 %v881, 96
        %v1004 = vpop.permute.xlu0 %1003
        %v1006 = vsel %vm883, %v1001, 0
        %v1009 = vsel %vm883, %v1004, 0
        %1011 = vmatprep.subr.bf16.mxu0 0
        %1012 = vmatpush1.bf16.xpose.msra.mxu0 %v1009
        %1013 = vmatprep.subr.bf16.mxu0 0
        %1014 = vmatpush1.bf16.xpose.msra.mxu0 0
        %1015 = vmatprep.subr.bf16.mxu0 0
        %1016 = vmatpush1.bf16.xpose.msra.mxu0 0
        %1017 = vmatprep.subr.bf16.mxu0 0
        %1018 = vmatpush1.bf16.xpose.msra.mxu0 0
        %1019 = vmatprep.subr.bf16.mxu0 0
        %1020 = vmatpush1.bf16.xpose.msra.mxu0 0
        %1021 = vmatprep.subr.bf16.mxu0 0
        %1022 = vmatpush1.bf16.xpose.msra.mxu0 0
        %1023 = vmatprep.subr.bf16.mxu0 0
        %1024 = vmatpush1.bf16.xpose.msra.mxu0 0
        %1025 = vmatprep.subr.bf16.mxu0 0
        %1026 = vmatpush1.bf16.xpose.msra.mxu0 0
        %1027 = vmatprep.subr.bf16.mxu0 0
        %1028 = vmatpush1.bf16.xpose.msra.mxu0 0
        %1029 = vmatprep.subr.bf16.mxu0 0
        %1030 = vmatpush1.bf16.xpose.msra.mxu0 0
        %1031 = vmatprep.subr.bf16.mxu0 0
        %1032 = vmatpush1.bf16.xpose.msra.mxu0 0
        %1033 = vmatprep.subr.bf16.mxu0 0
        %1034 = vmatpush1.bf16.xpose.msra.mxu0 0
        %1035 = vmatprep.subr.bf16.mxu0 0
        %1036 = vmatpush1.bf16.xpose.msra.mxu0 0
        %1037 = vmatprep.subr.bf16.mxu0 0
        %1038 = vmatpush1.bf16.xpose.msra.mxu0 0
        %1039 = vmatprep.subr.bf16.mxu0 0
        %1040 = vmatpush1.bf16.xpose.msra.mxu0 0
        %1041 = vmatprep.subr.bf16.mxu0 0
        %1042 = vmatpush1.bf16.xpose.msra.mxu0 0
        %1043 = vmatprep.mubr.bf16.mxu0 0
        %1044 = vmatmul.mubr.bf16.gmra.mrb[0].mxu0 %v1006
        %v1045 = vpop.f32.mrb[0].mxu0
        %v1046 = vadd.f32 0.0, %v1045
        %v1047 = vpop.f32.mrb[0].mxu0
        %v1048 = vpop.f32.mrb[0].mxu0
        %v1049 = vadd.f32 0.0, %v1048
        %v1050 = vpop.f32.mrb[0].mxu0
        %1051 = vdwg.mxu0
        %v1052 = vsel %vm931, %v1046, -inf
        %1053 = vmax.xlane.f32.xlu0 %v1052
        %v1054 = vpop.xlane.xlu0 %1053
        %v1055 = vsel %vm931, %v1049, -inf
        %1056 = vmax.xlane.f32.xlu0 %v1055
        %v1057 = vpop.xlane.xlu0 %1056
        %v1058 = vsub.f32 %v1046, %v1054
        %v1059 = vsub.f32 %v1049, %v1057
        %v1060 = vmul.f32 %v1058, 1.442695
        %v1061 = vpow.pop %v1060
        %v1062 = vmul.f32 %v1059, 1.442695
        %v1063 = vpow.pop %v1062
        %v1064 = vsel %vm931, %v1061, 0.0
        %1065 = vadd.xlane.f32.xlu0 %v1064
        %v1066 = vpop.xlane.xlu0 %1065
        %v1067 = vsel %vm931, %v1063, 0.0
        %1068 = vadd.xlane.f32.xlu0 %v1067
        %v1069 = vpop.xlane.xlu0 %1068
        %v1070 = vrcp.pop %v1066
        %v1071 = vmul.f32 %v1061, %v1070
        %v1072 = vrcp.pop %v1069
        %v1073 = vmul.f32 %v1063, %v1072
        %v1074 = vpack.c.bf16 %v1073, %v1071
        %1076 = vrot.lane.b32.xlu0 %v882, 96
        %v1077 = vpop.permute.xlu0 %1076
        %v1080 = vsel %vm931, %v1074, 0
        %1082 = vmatprep.subr.bf16.mxu0 0
        %1083 = vmatpush1.bf16.msra.mxu0 %v1077
        %1084 = vmatprep.subr.bf16.mxu0 0
        %1085 = vmatpush1.bf16.msra.mxu0 0
        %1086 = vmatprep.subr.bf16.mxu0 0
        %1087 = vmatpush1.bf16.msra.mxu0 0
        %1088 = vmatprep.subr.bf16.mxu0 0
        %1089 = vmatpush1.bf16.msra.mxu0 0
        %1090 = vmatprep.subr.bf16.mxu0 0
        %1091 = vmatpush1.bf16.msra.mxu0 0
        %1092 = vmatprep.subr.bf16.mxu0 0
        %1093 = vmatpush1.bf16.msra.mxu0 0
        %1094 = vmatprep.subr.bf16.mxu0 0
        %1095 = vmatpush1.bf16.msra.mxu0 0
        %1096 = vmatprep.subr.bf16.mxu0 0
        %1097 = vmatpush1.bf16.msra.mxu0 0
        %1098 = vmatprep.subr.bf16.mxu0 0
        %1099 = vmatpush1.bf16.msra.mxu0 0
        %1100 = vmatprep.subr.bf16.mxu0 0
        %1101 = vmatpush1.bf16.msra.mxu0 0
        %1102 = vmatprep.subr.bf16.mxu0 0
        %1103 = vmatpush1.bf16.msra.mxu0 0
        %1104 = vmatprep.subr.bf16.mxu0 0
        %1105 = vmatpush1.bf16.msra.mxu0 0
        %1106 = vmatprep.subr.bf16.mxu0 0
        %1107 = vmatpush1.bf16.msra.mxu0 0
        %1108 = vmatprep.subr.bf16.mxu0 0
        %1109 = vmatpush1.bf16.msra.mxu0 0
        %1110 = vmatprep.subr.bf16.mxu0 0
        %1111 = vmatpush1.bf16.msra.mxu0 0
        %1112 = vmatprep.subr.bf16.mxu0 0
        %1113 = vmatpush1.bf16.msra.mxu0 0
        %1114 = vmatprep.mubr.bf16.mxu0 0
        %1115 = vmatmul.mubr.bf16.gmra.mrb[0].mxu0 %v1080
        %v1116 = vpop.f32.mrb[0].mxu0
        %v1117 = vadd.f32 0.0, %v1116
        %v1118 = vpop.f32.mrb[0].mxu0
        %v1119 = vpop.f32.mrb[0].mxu0
        %v1120 = vadd.f32 0.0, %v1119
        %v1121 = vpop.f32.mrb[0].mxu0
        %1122 = vdwg.mxu0
        %1123 = vrot.lane.b32.xlu0 %v880, 64
        %v1124 = vpop.permute.xlu0 %1123
        %1125 = vrot.lane.b32.xlu0 %v881, 64
        %v1126 = vpop.permute.xlu0 %1125
        %v1128 = vsel %vm883, %v1124, 0
        %v1131 = vsel %vm883, %v1126, 0
        %1133 = vmatprep.subr.bf16.mxu0 0
        %1134 = vmatpush1.bf16.xpose.msra.mxu0 %v1131
        %1135 = vmatprep.subr.bf16.mxu0 0
        %1136 = vmatpush1.bf16.xpose.msra.mxu0 0
        %1137 = vmatprep.subr.bf16.mxu0 0
        %1138 = vmatpush1.bf16.xpose.msra.mxu0 0
        %1139 = vmatprep.subr.bf16.mxu0 0
        %1140 = vmatpush1.bf16.xpose.msra.mxu0 0
        %1141 = vmatprep.subr.bf16.mxu0 0
        %1142 = vmatpush1.bf16.xpose.msra.mxu0 0
        %1143 = vmatprep.subr.bf16.mxu0 0
        %1144 = vmatpush1.bf16.xpose.msra.mxu0 0
        %1145 = vmatprep.subr.bf16.mxu0 0
        %1146 = vmatpush1.bf16.xpose.msra.mxu0 0
        %1147 = vmatprep.subr.bf16.mxu0 0
        %1148 = vmatpush1.bf16.xpose.msra.mxu0 0
        %1149 = vmatprep.subr.bf16.mxu0 0
        %1150 = vmatpush1.bf16.xpose.msra.mxu0 0
        %1151 = vmatprep.subr.bf16.mxu0 0
        %1152 = vmatpush1.bf16.xpose.msra.mxu0 0
        %1153 = vmatprep.subr.bf16.mxu0 0
        %1154 = vmatpush1.bf16.xpose.msra.mxu0 0
        %1155 = vmatprep.subr.bf16.mxu0 0
        %1156 = vmatpush1.bf16.xpose.msra.mxu0 0
        %1157 = vmatprep.subr.bf16.mxu0 0
        %1158 = vmatpush1.bf16.xpose.msra.mxu0 0
        %1159 = vmatprep.subr.bf16.mxu0 0
        %1160 = vmatpush1.bf16.xpose.msra.mxu0 0
        %1161 = vmatprep.subr.bf16.mxu0 0
        %1162 = vmatpush1.bf16.xpose.msra.mxu0 0
        %1163 = vmatprep.subr.bf16.mxu0 0
        %1164 = vmatpush1.bf16.xpose.msra.mxu0 0
        %1165 = vmatprep.mubr.bf16.mxu0 0
        %1166 = vmatmul.mubr.bf16.gmra.mrb[0].mxu0 %v1128
        %v1167 = vpop.f32.mrb[0].mxu0
        %v1168 = vadd.f32 0.0, %v1167
        %v1169 = vpop.f32.mrb[0].mxu0
        %v1170 = vpop.f32.mrb[0].mxu0
        %v1171 = vadd.f32 0.0, %v1170
        %v1172 = vpop.f32.mrb[0].mxu0
        %1173 = vdwg.mxu0
        %v1174 = vsel %vm931, %v1168, -inf
        %1175 = vmax.xlane.f32.xlu0 %v1174
        %v1176 = vpop.xlane.xlu0 %1175
        %v1177 = vsel %vm931, %v1171, -inf
        %1178 = vmax.xlane.f32.xlu0 %v1177
        %v1179 = vpop.xlane.xlu0 %1178
        %v1180 = vsub.f32 %v1168, %v1176
        %v1181 = vsub.f32 %v1171, %v1179
        %v1182 = vmul.f32 %v1180, 1.442695
        %v1183 = vpow.pop %v1182
        %v1184 = vmul.f32 %v1181, 1.442695
        %v1185 = vpow.pop %v1184
        %v1186 = vsel %vm931, %v1183, 0.0
        %1187 = vadd.xlane.f32.xlu0 %v1186
        %v1188 = vpop.xlane.xlu0 %1187
        %v1189 = vsel %vm931, %v1185, 0.0
        %1190 = vadd.xlane.f32.xlu0 %v1189
        %v1191 = vpop.xlane.xlu0 %1190
        %v1192 = vrcp.pop %v1188
        %v1193 = vmul.f32 %v1183, %v1192
        %v1194 = vrcp.pop %v1191
        %v1195 = vmul.f32 %v1185, %v1194
        %v1196 = vpack.c.bf16 %v1195, %v1193
        %1197 = vrot.lane.b32.xlu0 %v882, 64
        %v1198 = vpop.permute.xlu0 %1197
        %v1201 = vsel %vm931, %v1196, 0
        %1203 = vmatprep.subr.bf16.mxu0 0
        %1204 = vmatpush1.bf16.msra.mxu0 %v1198
        %1205 = vmatprep.subr.bf16.mxu0 0
        %1206 = vmatpush1.bf16.msra.mxu0 0
        %1207 = vmatprep.subr.bf16.mxu0 0
        %1208 = vmatpush1.bf16.msra.mxu0 0
        %1209 = vmatprep.subr.bf16.mxu0 0
        %1210 = vmatpush1.bf16.msra.mxu0 0
        %1211 = vmatprep.subr.bf16.mxu0 0
        %1212 = vmatpush1.bf16.msra.mxu0 0
        %1213 = vmatprep.subr.bf16.mxu0 0
        %1214 = vmatpush1.bf16.msra.mxu0 0
        %1215 = vmatprep.subr.bf16.mxu0 0
        %1216 = vmatpush1.bf16.msra.mxu0 0
        %1217 = vmatprep.subr.bf16.mxu0 0
        %1218 = vmatpush1.bf16.msra.mxu0 0
        %1219 = vmatprep.subr.bf16.mxu0 0
        %1220 = vmatpush1.bf16.msra.mxu0 0
        %1221 = vmatprep.subr.bf16.mxu0 0
        %1222 = vmatpush1.bf16.msra.mxu0 0
        %1223 = vmatprep.subr.bf16.mxu0 0
        %1224 = vmatpush1.bf16.msra.mxu0 0
        %1225 = vmatprep.subr.bf16.mxu0 0
        %1226 = vmatpush1.bf16.msra.mxu0 0
        %1227 = vmatprep.subr.bf16.mxu0 0
        %1228 = vmatpush1.bf16.msra.mxu0 0
        %1229 = vmatprep.subr.bf16.mxu0 0
        %1230 = vmatpush1.bf16.msra.mxu0 0
        %1231 = vmatprep.subr.bf16.mxu0 0
        %1232 = vmatpush1.bf16.msra.mxu0 0
        %1233 = vmatprep.subr.bf16.mxu0 0
        %1234 = vmatpush1.bf16.msra.mxu0 0
        %1235 = vmatprep.mubr.bf16.mxu0 0
        %1236 = vmatmul.mubr.bf16.gmra.mrb[0].mxu0 %v1201
        %v1237 = vpop.f32.mrb[0].mxu0
        %v1238 = vadd.f32 0.0, %v1237
        %v1239 = vpop.f32.mrb[0].mxu0
        %v1240 = vpop.f32.mrb[0].mxu0
        %v1241 = vadd.f32 0.0, %v1240
        %v1242 = vpop.f32.mrb[0].mxu0
        %1243 = vdwg.mxu0
        %1244 = vrot.lane.b32.xlu0 %v880, 32
        %v1245 = vpop.permute.xlu0 %1244
        %1246 = vrot.lane.b32.xlu0 %v881, 32
        %v1247 = vpop.permute.xlu0 %1246
        %v1249 = vsel %vm883, %v1245, 0
        %v1252 = vsel %vm883, %v1247, 0
        %1254 = vmatprep.subr.bf16.mxu0 0
        %1255 = vmatpush1.bf16.xpose.msra.mxu0 %v1252
        %1256 = vmatprep.subr.bf16.mxu0 0
        %1257 = vmatpush1.bf16.xpose.msra.mxu0 0
        %1258 = vmatprep.subr.bf16.mxu0 0
        %1259 = vmatpush1.bf16.xpose.msra.mxu0 0
        %1260 = vmatprep.subr.bf16.mxu0 0
        %1261 = vmatpush1.bf16.xpose.msra.mxu0 0
        %1262 = vmatprep.subr.bf16.mxu0 0
        %1263 = vmatpush1.bf16.xpose.msra.mxu0 0
        %1264 = vmatprep.subr.bf16.mxu0 0
        %1265 = vmatpush1.bf16.xpose.msra.mxu0 0
        %1266 = vmatprep.subr.bf16.mxu0 0
        %1267 = vmatpush1.bf16.xpose.msra.mxu0 0
        %1268 = vmatprep.subr.bf16.mxu0 0
        %1269 = vmatpush1.bf16.xpose.msra.mxu0 0
        %1270 = vmatprep.subr.bf16.mxu0 0
        %1271 = vmatpush1.bf16.xpose.msra.mxu0 0
        %1272 = vmatprep.subr.bf16.mxu0 0
        %1273 = vmatpush1.bf16.xpose.msra.mxu0 0
        %1274 = vmatprep.subr.bf16.mxu0 0
        %1275 = vmatpush1.bf16.xpose.msra.mxu0 0
        %1276 = vmatprep.subr.bf16.mxu0 0
        %1277 = vmatpush1.bf16.xpose.msra.mxu0 0
        %1278 = vmatprep.subr.bf16.mxu0 0
        %1279 = vmatpush1.bf16.xpose.msra.mxu0 0
        %1280 = vmatprep.subr.bf16.mxu0 0
        %1281 = vmatpush1.bf16.xpose.msra.mxu0 0
        %1282 = vmatprep.subr.bf16.mxu0 0
        %1283 = vmatpush1.bf16.xpose.msra.mxu0 0
        %1284 = vmatprep.subr.bf16.mxu0 0
        %1285 = vmatpush1.bf16.xpose.msra.mxu0 0
        %1286 = vmatprep.mubr.bf16.mxu0 0
        %1287 = vmatmul.mubr.bf16.gmra.mrb[0].mxu0 %v1249
        %v1288 = vpop.f32.mrb[0].mxu0
        %v1289 = vadd.f32 0.0, %v1288
        %v1290 = vpop.f32.mrb[0].mxu0
        %v1291 = vpop.f32.mrb[0].mxu0
        %v1292 = vadd.f32 0.0, %v1291
        %v1293 = vpop.f32.mrb[0].mxu0
        %1294 = vdwg.mxu0
        %v1295 = vsel %vm931, %v1289, -inf
        %1296 = vmax.xlane.f32.xlu0 %v1295
        %v1297 = vpop.xlane.xlu0 %1296
        %v1298 = vsel %vm931, %v1292, -inf
        %1299 = vmax.xlane.f32.xlu0 %v1298
        %v1300 = vpop.xlane.xlu0 %1299
        %v1301 = vsub.f32 %v1289, %v1297
        %v1302 = vsub.f32 %v1292, %v1300
        %v1303 = vmul.f32 %v1301, 1.442695
        %v1304 = vpow.pop %v1303
        %v1305 = vmul.f32 %v1302, 1.442695
        %v1306 = vpow.pop %v1305
        %v1307 = vsel %vm931, %v1304, 0.0
        %1308 = vadd.xlane.f32.xlu0 %v1307
        %v1309 = vpop.xlane.xlu0 %1308
        %v1310 = vsel %vm931, %v1306, 0.0
        %1311 = vadd.xlane.f32.xlu0 %v1310
        %v1312 = vpop.xlane.xlu0 %1311
        %v1313 = vrcp.pop %v1309
        %v1314 = vmul.f32 %v1304, %v1313
        %v1315 = vrcp.pop %v1312
        %v1316 = vmul.f32 %v1306, %v1315
        %v1317 = vpack.c.bf16 %v1316, %v1314
        %1318 = vrot.lane.b32.xlu0 %v882, 32
        %v1319 = vpop.permute.xlu0 %1318
        %v1322 = vsel %vm931, %v1317, 0
        %1324 = vmatprep.subr.bf16.mxu0 0
        %1325 = vmatpush1.bf16.msra.mxu0 %v1319
        %1326 = vmatprep.subr.bf16.mxu0 0
        %1327 = vmatpush1.bf16.msra.mxu0 0
        %1328 = vmatprep.subr.bf16.mxu0 0
        %1329 = vmatpush1.bf16.msra.mxu0 0
        %1330 = vmatprep.subr.bf16.mxu0 0
        %1331 = vmatpush1.bf16.msra.mxu0 0
        %1332 = vmatprep.subr.bf16.mxu0 0
        %1333 = vmatpush1.bf16.msra.mxu0 0
        %1334 = vmatprep.subr.bf16.mxu0 0
        %1335 = vmatpush1.bf16.msra.mxu0 0
        %1336 = vmatprep.subr.bf16.mxu0 0
        %1337 = vmatpush1.bf16.msra.mxu0 0
        %1338 = vmatprep.subr.bf16.mxu0 0
        %1339 = vmatpush1.bf16.msra.mxu0 0
        %1340 = vmatprep.subr.bf16.mxu0 0
        %1341 = vmatpush1.bf16.msra.mxu0 0
        %1342 = vmatprep.subr.bf16.mxu0 0
        %1343 = vmatpush1.bf16.msra.mxu0 0
        %1344 = vmatprep.subr.bf16.mxu0 0
        %1345 = vmatpush1.bf16.msra.mxu0 0
        %1346 = vmatprep.subr.bf16.mxu0 0
        %1347 = vmatpush1.bf16.msra.mxu0 0
        %1348 = vmatprep.subr.bf16.mxu0 0
        %1349 = vmatpush1.bf16.msra.mxu0 0
        %1350 = vmatprep.subr.bf16.mxu0 0
        %1351 = vmatpush1.bf16.msra.mxu0 0
        %1352 = vmatprep.subr.bf16.mxu0 0
        %1353 = vmatpush1.bf16.msra.mxu0 0
        %1354 = vmatprep.subr.bf16.mxu0 0
        %1355 = vmatpush1.bf16.msra.mxu0 0
        %1356 = vmatprep.mubr.bf16.mxu0 0
        %1357 = vmatmul.mubr.bf16.gmra.mrb[0].mxu0 %v1322
        %v1358 = vpop.f32.mrb[0].mxu0
        %v1359 = vadd.f32 0.0, %v1358
        %v1360 = vpop.f32.mrb[0].mxu0
        %v1361 = vpop.f32.mrb[0].mxu0
        %v1362 = vadd.f32 0.0, %v1361
        %v1363 = vpop.f32.mrb[0].mxu0
        %1364 = vdwg.mxu0
        %1367 = vrot.lane.b32.xlu0 %v1117, 32
        %v1368 = vpop.permute.xlu0 %1367
        %1369 = vrot.lane.b32.xlu0 %v1120, 32
        %v1370 = vpop.permute.xlu0 %1369
        %1375 = vrot.lane.b32.xlu0 %v1238, 64
        %v1376 = vpop.permute.xlu0 %1375
        %1377 = vrot.lane.b32.xlu0 %v1241, 64
        %v1378 = vpop.permute.xlu0 %1377
        %1383 = vrot.lane.b32.xlu0 %v1359, 96
        %v1384 = vpop.permute.xlu0 %1383
        %1385 = vrot.lane.b32.xlu0 %v1362, 96
        %v1386 = vpop.permute.xlu0 %1385
        %v1389 = vsel %vm883, %v993, %v1368
        %v1390 = vsel %vm883, %v996, %v1370
        %vm1391 = vcmask 523264
        %v1392 = vsel %vm1391, %v1389, %v1376
        %v1393 = vsel %vm1391, %v1390, %v1378
        %vm1394 = vcmask 785408
        %v1395 = vsel %vm1394, %v1392, %v1384
        %v1396 = vsel %vm1394, %v1393, %v1386
        %v1397 = vpack.c.bf16 %v1396, %v1395
        %v1398 = vld [vmem:[%s508] sm:$0xf]
        %v1399 = vld [vmem:[%s508 + $0x4] sm:$0xf]
        %v1400 = vld [vmem:[%s508 + $0x8] sm:$0xf]
        %v1401 = vld [vmem:[%s508 + $0xc] sm:$0xf]
        %v1402 = vld [vmem:[%s508 + $0x10] sm:$0xf]
        %v1403 = vld [vmem:[%s508 + $0x14] sm:$0xf]
        %v1404 = vld [vmem:[%s508 + $0x18] sm:$0xf]
        %v1405 = vld [vmem:[%s508 + $0x1c] sm:$0xf]
        %v1406 = vld [vmem:[%s508 + $0x20] sm:$0xf]
        %v1407 = vld [vmem:[%s508 + $0x24] sm:$0xf]
        %v1408 = vld [vmem:[%s508 + $0x28] sm:$0xf]
        %v1409 = vld [vmem:[%s508 + $0x2c] sm:$0xf]
        %v1410 = vld [vmem:[%s508 + $0x30] sm:$0xf]
        %v1411 = vld [vmem:[%s508 + $0x34] sm:$0xf]
        %v1412 = vld [vmem:[%s508 + $0x38] sm:$0xf]
        %v1413 = vld [vmem:[%s508 + $0x3c] sm:$0xf]
        %v1414 = vld [vmem:[%s516] sm:$0x1]
        %v1416 = vlaneseq
        %v1417 = vshrl.u32 %v1416, 7
        %v1418 = vsub.s32 0, %v1417
        %v1419 = vrot.slane %v1414, %v1418
        %v1437 = vunpack.c.l.b16 %v1398
        %v1438 = vunpack.c.l.b16 %v1399
        %v1439 = vunpack.c.l.b16 %v1400
        %v1440 = vunpack.c.l.b16 %v1401
        %v1441 = vunpack.c.l.b16 %v1402
        %v1442 = vunpack.c.l.b16 %v1403
        %v1443 = vunpack.c.l.b16 %v1404
        %v1444 = vunpack.c.l.b16 %v1405
        %v1445 = vunpack.c.l.b16 %v1406
        %v1446 = vunpack.c.l.b16 %v1407
        %v1447 = vunpack.c.l.b16 %v1408
        %v1448 = vunpack.c.l.b16 %v1409
        %v1449 = vunpack.c.l.b16 %v1410
        %v1450 = vunpack.c.l.b16 %v1411
        %v1451 = vunpack.c.l.b16 %v1412
        %v1452 = vunpack.c.l.b16 %v1413
        %v1453 = vpack.c.b16 %v1438, %v1437
        %v1454 = vpack.c.b16 %v1440, %v1439
        %v1455 = vpack.c.b16 %v1442, %v1441
        %v1456 = vpack.c.b16 %v1444, %v1443
        %v1457 = vpack.c.b16 %v1446, %v1445
        %v1458 = vpack.c.b16 %v1448, %v1447
        %v1459 = vpack.c.b16 %v1450, %v1449
        %v1460 = vpack.c.b16 %v1452, %v1451
        %1469 = vmatprep.subr.bf16.mxu0 0
        %1470 = vmatpush1.bf16.msra.mxu0 %v1453
        %1471 = vmatprep.subr.bf16.mxu0 0
        %1472 = vmatpush1.bf16.msra.mxu0 %v1454
        %1473 = vmatprep.subr.bf16.mxu0 0
        %1474 = vmatpush1.bf16.msra.mxu0 %v1455
        %1475 = vmatprep.subr.bf16.mxu0 0
        %1476 = vmatpush1.bf16.msra.mxu0 %v1456
        %1477 = vmatprep.subr.bf16.mxu0 0
        %1478 = vmatpush1.bf16.msra.mxu0 %v1457
        %1479 = vmatprep.subr.bf16.mxu0 0
        %1480 = vmatpush1.bf16.msra.mxu0 %v1458
        %1481 = vmatprep.subr.bf16.mxu0 0
        %1482 = vmatpush1.bf16.msra.mxu0 %v1459
        %1483 = vmatprep.subr.bf16.mxu0 0
        %1484 = vmatpush1.bf16.msra.mxu0 %v1460
        %1485 = vmatprep.subr.bf16.mxu0 0
        %1486 = vmatpush1.bf16.msra.mxu0 0
        %1487 = vmatprep.subr.bf16.mxu0 0
        %1488 = vmatpush1.bf16.msra.mxu0 0
        %1489 = vmatprep.subr.bf16.mxu0 0
        %1490 = vmatpush1.bf16.msra.mxu0 0
        %1491 = vmatprep.subr.bf16.mxu0 0
        %1492 = vmatpush1.bf16.msra.mxu0 0
        %1493 = vmatprep.subr.bf16.mxu0 0
        %1494 = vmatpush1.bf16.msra.mxu0 0
        %1495 = vmatprep.subr.bf16.mxu0 0
        %1496 = vmatpush1.bf16.msra.mxu0 0
        %1497 = vmatprep.subr.bf16.mxu0 0
        %1498 = vmatpush1.bf16.msra.mxu0 0
        %1499 = vmatprep.subr.bf16.mxu0 0
        %1500 = vmatpush1.bf16.msra.mxu0 0
        %1501 = vmatprep.mubr.bf16.mxu0 0
        %1502 = vmatmul.mubr.bf16.gmra.mrb[0].mxu0 %v1397
        %v1503 = vpop.f32.mrb[0].mxu0
        %v1504 = vadd.f32 %v1419, %v1503
        %v1505 = vpop.f32.mrb[0].mxu0
        %v1506 = vpop.f32.mrb[0].mxu0
        %v1507 = vadd.f32 %v1419, %v1506
        %v1508 = vpop.f32.mrb[0].mxu0
        %1509 = vdwg.mxu0
        %v1510 = vld [vmem:[%s7] sm:$0xf]
        %v1511 = vld [vmem:[%s7 + $0x4] sm:$0xf]
        %v1512 = vadd.f32 %v616, %v1504
        %v1513 = vadd.f32 %v617, %v1507
        %v1514 = vpack.c.bf16 %v1513, %v1512
        %v1517 = vunpack.c.l.b16 %v1510
        %v1518 = vunpack.c.l.b16 %v1511
        %v1519 = vpack.c.b16 %v1518, %v1517
        %v1521 = vsel %vm931, %v1519, 0
        %1523 = vmatprep.subr.bf16.mxu0 0
        %1524 = vmatpush1.bf16.msra.mxu0 %v1514
        %1525 = vmatprep.subr.bf16.mxu0 0
        %1526 = vmatpush1.bf16.msra.mxu0 0
        %1527 = vmatprep.subr.bf16.mxu0 0
        %1528 = vmatpush1.bf16.msra.mxu0 0
        %1529 = vmatprep.subr.bf16.mxu0 0
        %1530 = vmatpush1.bf16.msra.mxu0 0
        %1531 = vmatprep.subr.bf16.mxu0 0
        %1532 = vmatpush1.bf16.msra.mxu0 0
        %1533 = vmatprep.subr.bf16.mxu0 0
        %1534 = vmatpush1.bf16.msra.mxu0 0
        %1535 = vmatprep.subr.bf16.mxu0 0
        %1536 = vmatpush1.bf16.msra.mxu0 0
        %1537 = vmatprep.subr.bf16.mxu0 0
        %1538 = vmatpush1.bf16.msra.mxu0 0
        %1539 = vmatprep.subr.bf16.mxu0 0
        %1540 = vmatpush1.bf16.msra.mxu0 0
        %1541 = vmatprep.subr.bf16.mxu0 0
        %1542 = vmatpush1.bf16.msra.mxu0 0
        %1543 = vmatprep.subr.bf16.mxu0 0
        %1544 = vmatpush1.bf16.msra.mxu0 0
        %1545 = vmatprep.subr.bf16.mxu0 0
        %1546 = vmatpush1.bf16.msra.mxu0 0
        %1547 = vmatprep.subr.bf16.mxu0 0
        %1548 = vmatpush1.bf16.msra.mxu0 0
        %1549 = vmatprep.subr.bf16.mxu0 0
        %1550 = vmatpush1.bf16.msra.mxu0 0
        %1551 = vmatprep.subr.bf16.mxu0 0
        %1552 = vmatpush1.bf16.msra.mxu0 0
        %1553 = vmatprep.subr.bf16.mxu0 0
        %1554 = vmatpush1.bf16.msra.mxu0 0
        %1555 = vmatprep.mubr.bf16.mxu0 0
        %1556 = vmatmul.mubr.bf16.gmra.mrb[0].mxu0 %v1521
        %v1557 = vpop.f32.mrb[0].mxu0
        %v1558 = vadd.f32 0.0, %v1557
        %v1559 = vpop.f32.mrb[0].mxu0
        %v1560 = vpop.f32.mrb[0].mxu0
        %v1561 = vadd.f32 0.0, %v1560
        %v1562 = vpop.f32.mrb[0].mxu0
        %1563 = vdwg.mxu0
        %v1564 = vpack.c.bf16 %v1561, %v1558
        %v1565 = vld [vmem:[%s525] sm:$0xff]
        %v1566 = vld [vmem:[%s525 + $0x8] sm:$0xff]
        %v1567 = vld [vmem:[%s525 + $0x10] sm:$0xff]
        %v1568 = vld [vmem:[%s525 + $0x18] sm:$0xff]
        %v1569 = vld [vmem:[%s525 + $0x20] sm:$0xff]
        %v1570 = vld [vmem:[%s525 + $0x28] sm:$0xff]
        %v1571 = vld [vmem:[%s525 + $0x30] sm:$0xff]
        %v1572 = vld [vmem:[%s525 + $0x38] sm:$0xff]
        %v1573 = vld [vmem:[%s525 + $0x40] sm:$0xff]
        %v1574 = vld [vmem:[%s525 + $0x48] sm:$0xff]
        %v1575 = vld [vmem:[%s525 + $0x50] sm:$0xff]
        %v1576 = vld [vmem:[%s525 + $0x58] sm:$0xff]
        %v1577 = vld [vmem:[%s525 + $0x60] sm:$0xff]
        %v1578 = vld [vmem:[%s525 + $0x68] sm:$0xff]
        %v1579 = vld [vmem:[%s525 + $0x70] sm:$0xff]
        %v1580 = vld [vmem:[%s525 + $0x78] sm:$0xff]
        %v1597 = vunpack.c.l.b16 %v1565
        %v1598 = vunpack.c.h.b16 %v1565
        %v1599 = vunpack.c.l.b16 %v1566
        %v1600 = vunpack.c.h.b16 %v1566
        %v1601 = vunpack.c.l.b16 %v1567
        %v1602 = vunpack.c.h.b16 %v1567
        %v1603 = vunpack.c.l.b16 %v1568
        %v1604 = vunpack.c.h.b16 %v1568
        %v1605 = vunpack.c.l.b16 %v1569
        %v1606 = vunpack.c.h.b16 %v1569
        %v1607 = vunpack.c.l.b16 %v1570
        %v1608 = vunpack.c.h.b16 %v1570
        %v1609 = vunpack.c.l.b16 %v1571
        %v1610 = vunpack.c.h.b16 %v1571
        %v1611 = vunpack.c.l.b16 %v1572
        %v1612 = vunpack.c.h.b16 %v1572
        %v1613 = vunpack.c.l.b16 %v1573
        %v1614 = vunpack.c.h.b16 %v1573
        %v1615 = vunpack.c.l.b16 %v1574
        %v1616 = vunpack.c.h.b16 %v1574
        %v1617 = vunpack.c.l.b16 %v1575
        %v1618 = vunpack.c.h.b16 %v1575
        %v1619 = vunpack.c.l.b16 %v1576
        %v1620 = vunpack.c.h.b16 %v1576
        %v1621 = vunpack.c.l.b16 %v1577
        %v1622 = vunpack.c.h.b16 %v1577
        %v1623 = vunpack.c.l.b16 %v1578
        %v1624 = vunpack.c.h.b16 %v1578
        %v1625 = vunpack.c.l.b16 %v1579
        %v1626 = vunpack.c.h.b16 %v1579
        %v1627 = vunpack.c.l.b16 %v1580
        %v1628 = vunpack.c.h.b16 %v1580
        %v1629 = vpack.c.b16 %v1599, %v1597
        %v1630 = vpack.c.b16 %v1600, %v1598
        %v1631 = vpack.c.b16 %v1603, %v1601
        %v1632 = vpack.c.b16 %v1604, %v1602
        %v1633 = vpack.c.b16 %v1607, %v1605
        %v1634 = vpack.c.b16 %v1608, %v1606
        %v1635 = vpack.c.b16 %v1611, %v1609
        %v1636 = vpack.c.b16 %v1612, %v1610
        %v1637 = vpack.c.b16 %v1615, %v1613
        %v1638 = vpack.c.b16 %v1616, %v1614
        %v1639 = vpack.c.b16 %v1619, %v1617
        %v1640 = vpack.c.b16 %v1620, %v1618
        %v1641 = vpack.c.b16 %v1623, %v1621
        %v1642 = vpack.c.b16 %v1624, %v1622
        %v1643 = vpack.c.b16 %v1627, %v1625
        %v1644 = vpack.c.b16 %v1628, %v1626
        %1661 = vmatprep.subr.bf16.mxu0 %v1630
        %1662 = vmatpush1.bf16.msra.mxu0 %v1629
        %1663 = vmatprep.subr.bf16.mxu0 %v1632
        %1664 = vmatpush1.bf16.msra.mxu0 %v1631
        %1665 = vmatprep.subr.bf16.mxu0 %v1634
        %1666 = vmatpush1.bf16.msra.mxu0 %v1633
        %1667 = vmatprep.subr.bf16.mxu0 %v1636
        %1668 = vmatpush1.bf16.msra.mxu0 %v1635
        %1669 = vmatprep.subr.bf16.mxu0 %v1638
        %1670 = vmatpush1.bf16.msra.mxu0 %v1637
        %1671 = vmatprep.subr.bf16.mxu0 %v1640
        %1672 = vmatpush1.bf16.msra.mxu0 %v1639
        %1673 = vmatprep.subr.bf16.mxu0 %v1642
        %1674 = vmatpush1.bf16.msra.mxu0 %v1641
        %1675 = vmatprep.subr.bf16.mxu0 %v1644
        %1676 = vmatpush1.bf16.msra.mxu0 %v1643
        %1677 = vmatprep.subr.bf16.mxu0 0
        %1678 = vmatpush1.bf16.msra.mxu0 0
        %1679 = vmatprep.subr.bf16.mxu0 0
        %1680 = vmatpush1.bf16.msra.mxu0 0
        %1681 = vmatprep.subr.bf16.mxu0 0
        %1682 = vmatpush1.bf16.msra.mxu0 0
        %1683 = vmatprep.subr.bf16.mxu0 0
        %1684 = vmatpush1.bf16.msra.mxu0 0
        %1685 = vmatprep.subr.bf16.mxu0 0
        %1686 = vmatpush1.bf16.msra.mxu0 0
        %1687 = vmatprep.subr.bf16.mxu0 0
        %1688 = vmatpush1.bf16.msra.mxu0 0
        %1689 = vmatprep.subr.bf16.mxu0 0
        %1690 = vmatpush1.bf16.msra.mxu0 0
        %1691 = vmatprep.subr.bf16.mxu0 0
        %1692 = vmatpush1.bf16.msra.mxu0 0
        %1693 = vmatprep.mubr.bf16.mxu0 0
        %1694 = vmatmul.mubr.bf16.gmra.mrb[0].mxu0 %v1564
        %v1695 = vpop.f32.mrb[0].mxu0
        %v1696 = vadd.f32 0.0, %v1695
        %v1697 = vpop.f32.mrb[0].mxu0
        %v1698 = vadd.f32 0.0, %v1697
        %v1699 = vpop.f32.mrb[0].mxu0
        %v1700 = vadd.f32 0.0, %v1699
        %v1701 = vpop.f32.mrb[0].mxu0
        %v1702 = vadd.f32 0.0, %v1701
        %1703 = vdwg.mxu0
        %v1704 = vmax.f32 %v1696, 0.0
        %v1705 = vmax.f32 %v1698, 0.0
        %v1706 = vmax.f32 %v1700, 0.0
        %v1707 = vmax.f32 %v1702, 0.0
        %v1708 = vpack.c.bf16 %v1706, %v1704
        %v1709 = vpack.c.bf16 %v1707, %v1705
        %v1710 = vld [vmem:[%s534] sm:$0xf]
        %v1711 = vld [vmem:[%s534 + $0x4] sm:$0xf]
        %v1712 = vld [vmem:[%s534 + $0x8] sm:$0xf]
        %v1713 = vld [vmem:[%s534 + $0xc] sm:$0xf]
        %v1714 = vld [vmem:[%s534 + $0x10] sm:$0xf]
        %v1715 = vld [vmem:[%s534 + $0x14] sm:$0xf]
        %v1716 = vld [vmem:[%s534 + $0x18] sm:$0xf]
        %v1717 = vld [vmem:[%s534 + $0x1c] sm:$0xf]
        %v1718 = vld [vmem:[%s534 + $0x20] sm:$0xf]
        %v1719 = vld [vmem:[%s534 + $0x24] sm:$0xf]
        %v1720 = vld [vmem:[%s534 + $0x28] sm:$0xf]
        %v1721 = vld [vmem:[%s534 + $0x2c] sm:$0xf]
        %v1722 = vld [vmem:[%s534 + $0x30] sm:$0xf]
        %v1723 = vld [vmem:[%s534 + $0x34] sm:$0xf]
        %v1724 = vld [vmem:[%s534 + $0x38] sm:$0xf]
        %v1725 = vld [vmem:[%s534 + $0x3c] sm:$0xf]
        %v1726 = vld [vmem:[%s534 + $0x40] sm:$0xf]
        %v1727 = vld [vmem:[%s534 + $0x44] sm:$0xf]
        %v1728 = vld [vmem:[%s534 + $0x48] sm:$0xf]
        %v1729 = vld [vmem:[%s534 + $0x4c] sm:$0xf]
        %v1730 = vld [vmem:[%s534 + $0x50] sm:$0xf]
        %v1731 = vld [vmem:[%s534 + $0x54] sm:$0xf]
        %v1732 = vld [vmem:[%s534 + $0x58] sm:$0xf]
        %v1733 = vld [vmem:[%s534 + $0x5c] sm:$0xf]
        %v1734 = vld [vmem:[%s534 + $0x60] sm:$0xf]
        %v1735 = vld [vmem:[%s534 + $0x64] sm:$0xf]
        %v1736 = vld [vmem:[%s534 + $0x68] sm:$0xf]
        %v1737 = vld [vmem:[%s534 + $0x6c] sm:$0xf]
        %v1738 = vld [vmem:[%s534 + $0x70] sm:$0xf]
        %v1739 = vld [vmem:[%s534 + $0x74] sm:$0xf]
        %v1740 = vld [vmem:[%s534 + $0x78] sm:$0xf]
        %v1741 = vld [vmem:[%s534 + $0x7c] sm:$0xf]
        %v1774 = vunpack.c.l.b16 %v1710
        %v1775 = vunpack.c.l.b16 %v1711
        %v1776 = vunpack.c.l.b16 %v1712
        %v1777 = vunpack.c.l.b16 %v1713
        %v1778 = vunpack.c.l.b16 %v1714
        %v1779 = vunpack.c.l.b16 %v1715
        %v1780 = vunpack.c.l.b16 %v1716
        %v1781 = vunpack.c.l.b16 %v1717
        %v1782 = vunpack.c.l.b16 %v1718
        %v1783 = vunpack.c.l.b16 %v1719
        %v1784 = vunpack.c.l.b16 %v1720
        %v1785 = vunpack.c.l.b16 %v1721
        %v1786 = vunpack.c.l.b16 %v1722
        %v1787 = vunpack.c.l.b16 %v1723
        %v1788 = vunpack.c.l.b16 %v1724
        %v1789 = vunpack.c.l.b16 %v1725
        %v1790 = vunpack.c.l.b16 %v1726
        %v1791 = vunpack.c.l.b16 %v1727
        %v1792 = vunpack.c.l.b16 %v1728
        %v1793 = vunpack.c.l.b16 %v1729
        %v1794 = vunpack.c.l.b16 %v1730
        %v1795 = vunpack.c.l.b16 %v1731
        %v1796 = vunpack.c.l.b16 %v1732
        %v1797 = vunpack.c.l.b16 %v1733
        %v1798 = vunpack.c.l.b16 %v1734
        %v1799 = vunpack.c.l.b16 %v1735
        %v1800 = vunpack.c.l.b16 %v1736
        %v1801 = vunpack.c.l.b16 %v1737
        %v1802 = vunpack.c.l.b16 %v1738
        %v1803 = vunpack.c.l.b16 %v1739
        %v1804 = vunpack.c.l.b16 %v1740
        %v1805 = vunpack.c.l.b16 %v1741
        %v1806 = vpack.c.b16 %v1775, %v1774
        %v1807 = vpack.c.b16 %v1777, %v1776
        %v1808 = vpack.c.b16 %v1779, %v1778
        %v1809 = vpack.c.b16 %v1781, %v1780
        %v1810 = vpack.c.b16 %v1783, %v1782
        %v1811 = vpack.c.b16 %v1785, %v1784
        %v1812 = vpack.c.b16 %v1787, %v1786
        %v1813 = vpack.c.b16 %v1789, %v1788
        %v1814 = vpack.c.b16 %v1791, %v1790
        %v1815 = vpack.c.b16 %v1793, %v1792
        %v1816 = vpack.c.b16 %v1795, %v1794
        %v1817 = vpack.c.b16 %v1797, %v1796
        %v1818 = vpack.c.b16 %v1799, %v1798
        %v1819 = vpack.c.b16 %v1801, %v1800
        %v1820 = vpack.c.b16 %v1803, %v1802
        %v1821 = vpack.c.b16 %v1805, %v1804
        %1838 = vmatprep.subr.bf16.mxu0 0
        %1839 = vmatpush1.bf16.msra.mxu0 %v1806
        %1840 = vmatprep.subr.bf16.mxu0 0
        %1841 = vmatpush1.bf16.msra.mxu0 %v1807
        %1842 = vmatprep.subr.bf16.mxu0 0
        %1843 = vmatpush1.bf16.msra.mxu0 %v1808
        %1844 = vmatprep.subr.bf16.mxu0 0
        %1845 = vmatpush1.bf16.msra.mxu0 %v1809
        %1846 = vmatprep.subr.bf16.mxu0 0
        %1847 = vmatpush1.bf16.msra.mxu0 %v1810
        %1848 = vmatprep.subr.bf16.mxu0 0
        %1849 = vmatpush1.bf16.msra.mxu0 %v1811
        %1850 = vmatprep.subr.bf16.mxu0 0
        %1851 = vmatpush1.bf16.msra.mxu0 %v1812
        %1852 = vmatprep.subr.bf16.mxu0 0
        %1853 = vmatpush1.bf16.msra.mxu0 %v1813
        %1854 = vmatprep.subr.bf16.mxu0 0
        %1855 = vmatpush1.bf16.msra.mxu0 %v1814
        %1856 = vmatprep.subr.bf16.mxu0 0
        %1857 = vmatpush1.bf16.msra.mxu0 %v1815
        %1858 = vmatprep.subr.bf16.mxu0 0
        %1859 = vmatpush1.bf16.msra.mxu0 %v1816
        %1860 = vmatprep.subr.bf16.mxu0 0
        %1861 = vmatpush1.bf16.msra.mxu0 %v1817
        %1862 = vmatprep.subr.bf16.mxu0 0
        %1863 = vmatpush1.bf16.msra.mxu0 %v1818
        %1864 = vmatprep.subr.bf16.mxu0 0
        %1865 = vmatpush1.bf16.msra.mxu0 %v1819
        %1866 = vmatprep.subr.bf16.mxu0 0
        %1867 = vmatpush1.bf16.msra.mxu0 %v1820
        %1868 = vmatprep.subr.bf16.mxu0 0
        %1869 = vmatpush1.bf16.msra.mxu0 %v1821
        %1870 = vmatprep.mubr.bf16.mxu0 %v1709
        %1871 = vmatmul.mubr.bf16.gmra.mrb[0].mxu0 %v1708
        %v1872 = vpop.f32.mrb[0].mxu0
        %v1873 = vadd.f32 0.0, %v1872
        %v1874 = vpop.f32.mrb[0].mxu0
        %v1875 = vpop.f32.mrb[0].mxu0
        %v1876 = vadd.f32 0.0, %v1875
        %v1877 = vpop.f32.mrb[0].mxu0
        %1878 = vdwg.mxu0
        %v1879 = vadd.f32 %v1558, %v1873
        %v1880 = vadd.f32 %v1561, %v1876
        %v1881 = vpack.c.bf16 %v1880, %v1879
        %1882 = vmatprep.subr.bf16.mxu0 0
        %1883 = vmatpush1.bf16.msra.mxu0 %v1881
        %1884 = vmatprep.subr.bf16.mxu0 0
        %1885 = vmatpush1.bf16.msra.mxu0 0
        %1886 = vmatprep.subr.bf16.mxu0 0
        %1887 = vmatpush1.bf16.msra.mxu0 0
        %1888 = vmatprep.subr.bf16.mxu0 0
        %1889 = vmatpush1.bf16.msra.mxu0 0
        %1890 = vmatprep.subr.bf16.mxu0 0
        %1891 = vmatpush1.bf16.msra.mxu0 0
        %1892 = vmatprep.subr.bf16.mxu0 0
        %1893 = vmatpush1.bf16.msra.mxu0 0
        %1894 = vmatprep.subr.bf16.mxu0 0
        %1895 = vmatpush1.bf16.msra.mxu0 0
        %1896 = vmatprep.subr.bf16.mxu0 0
        %1897 = vmatpush1.bf16.msra.mxu0 0
        %1898 = vmatprep.subr.bf16.mxu0 0
        %1899 = vmatpush1.bf16.msra.mxu0 0
        %1900 = vmatprep.subr.bf16.mxu0 0
        %1901 = vmatpush1.bf16.msra.mxu0 0
        %1902 = vmatprep.subr.bf16.mxu0 0
        %1903 = vmatpush1.bf16.msra.mxu0 0
        %1904 = vmatprep.subr.bf16.mxu0 0
        %1905 = vmatpush1.bf16.msra.mxu0 0
        %1906 = vmatprep.subr.bf16.mxu0 0
        %1907 = vmatpush1.bf16.msra.mxu0 0
        %1908 = vmatprep.subr.bf16.mxu0 0
        %1909 = vmatpush1.bf16.msra.mxu0 0
        %1910 = vmatprep.subr.bf16.mxu0 0
        %1911 = vmatpush1.bf16.msra.mxu0 0
        %1912 = vmatprep.subr.bf16.mxu0 0
        %1913 = vmatpush1.bf16.msra.mxu0 0
        %1914 = vmatprep.mubr.bf16.mxu0 0
        %1915 = vmatmul.mubr.bf16.gmra.mrb[0].mxu0 %v1521
        %v1916 = vpop.f32.mrb[0].mxu0
        %v1917 = vadd.f32 0.0, %v1916
        %v1918 = vpop.f32.mrb[0].mxu0
        %v1919 = vpop.f32.mrb[0].mxu0
        %v1920 = vadd.f32 0.0, %v1919
        %v1921 = vpop.f32.mrb[0].mxu0
        %1922 = vdwg.mxu0
        %1923 = vst [vmem:[#allocation2] sm:$0xff] %v1917
        %1924 = vst [vmem:[#allocation2 + $0x8] sm:$0xff] %v1920
        %p1925 = scmp.eq.s32.totalorder %s41, 1
        // Predicated region
        $region93: #{encoder_forward.1} parent=59 // pred_check
          %p1926 = pneg %p1925
        $region94: #{encoder_forward.1} parent=59 // pred_check_branch
          %1928 = sbr.rel (%p1926) target = $region96
        $region95: #{encoder_forward.1} parent=59 // pred_region
          %1929 = vadd.xlane.f32.xlu0 %v1917
          %v1930 = vpop.xlane.xlu0 %1929
          %1931 = vadd.xlane.f32.xlu0 %v1920
          %v1932 = vpop.xlane.xlu0 %1931
          %v1933 = vrcp.pop 128.0
          %v1934 = vmul.f32 %v1930, %v1933
          %v1935 = vmul.f32 %v1932, %v1933
          %v1936 = vsub.f32 %v1917, %v1934
          %v1937 = vsub.f32 %v1920, %v1935
          %v1938 = vmul.f32 %v1936, %v1936
          %v1939 = vmul.f32 %v1937, %v1937
          %1940 = vadd.xlane.f32.xlu0 %v1938
          %v1941 = vpop.xlane.xlu0 %1940
          %1942 = vadd.xlane.f32.xlu0 %v1939
          %v1943 = vpop.xlane.xlu0 %1942
          %v1944 = vmul.f32 %v1941, %v1933
          %v1945 = vmul.f32 %v1943, %v1933
          %v1946 = vadd.f32 %v1944, 1e-05
          %v1947 = vadd.f32 %v1945, 1e-05
          %v1948 = vrsqrt.pop %v1946
          %v1949 = vrsqrt.pop %v1947
          %v1950 = vmul.f32 %v1936, %v1948
          %v1951 = vmul.f32 %v1937, %v1949
          %v1952 = vld [vmem:[%s8] sm:$0x1]
          %v1954 = vlaneseq
          %v1955 = vshrl.u32 %v1954, 7
          %v1956 = vsub.s32 0, %v1955
          %v1957 = vrot.slane %v1952, %v1956
          %v1959 = vmul.f32 %v1950, %v1957
          %v1960 = vmul.f32 %v1951, %v1957
          %v1961 = vld [vmem:[#allocation14] sm:$0x1]
          %v1963 = vlaneseq
          %v1964 = vshrl.u32 %v1963, 7
          %v1965 = vsub.s32 0, %v1964
          %v1966 = vrot.slane %v1961, %v1965
          %v1968 = vadd.f32 %v1959, %v1966
          %v1969 = vadd.f32 %v1960, %v1966
          %v1970 = vadd.f32 %v1968, %v1969
          %v1971 = vrot.slane %v1970, 4
          %v1972 = vadd.f32 %v1970, %v1971
          %v1973 = vrot.slane %v1972, 2
          %v1974 = vadd.f32 %v1972, %v1973
          %v1975 = vrot.slane %v1974, 1
          %v1976 = vadd.f32 %v1974, %v1975
          %v1977 = vrcp.pop 16.0
          %v1978 = vmul.f32 %v1976, %v1977
          %v1979 = vsub.f32 %v1968, %v1978
          %v1980 = vsub.f32 %v1969, %v1978
          %1981 = vst [vmem:[%s602] sm:$0xff] %v1979
          %1982 = vst [vmem:[%s602 + $0x8] sm:$0xff] %v1980
        $region96: #{encoder_forward.1} parent=59 // pred_fallthru
          _
        %s1983 = sand.u32 %s301, 1
        %s1984 = scalar_lea.sflag [#allocation5], %s1983
        %s1985 = sand.u32 %s301, 1
        %s1986 = smul.addr %s1985, 16
        %s1987 = scalar_lea.vmem [#allocation15], %s1986
        // Predicated region
        $region97: #{encoder_forward.1} parent=59 // pred_check
          %p1988 = pneg %p311
        $region98: #{encoder_forward.1} parent=59 // pred_check_branch
          %1990 = sbr.rel (%p1988) target = $region100
        $region99: #{encoder_forward.1} parent=59 // pred_region
          %s1992 = ssub.s32 256, 256
          %1993 = vsyncadd %s1984, %s1992
          %s1994 = smul.addr %s40, 2
          %s1995 = smul.addr %s1994, 128
          %s1996 = scalar_lea.hbm %s10, %s1995
          %s1997 = sshll.u32 %s1987, 4
          %s1998 = int_to_ptr.vmem [resolvable:$true] %s1997
          %2003 = dma.vmem_to_hbm [thread:$0]  %s1998, 256, %s1996, %s1984, 128, 128, 8
        $region100: #{encoder_forward.1} parent=59 // pred_fallthru
          _
      $region60: #{encoder_forward.1} parent=5 // pred_fallthru
        _
      %p2004 = scmp.le.s32.totalorder 2, %s31
      // Predicated region
      $region101: #{encoder_forward.1} parent=5 // pred_check
        %p2005 = pneg %p2004
      $region102: #{encoder_forward.1} parent=5 // pred_check_branch
        %2007 = sbr.rel (%p2005) target = $region104
      $region103: #{encoder_forward.1} parent=5 // pred_region
        %s2008 = ssub.s32 %s31, 2
        // Predicated region
        $region105: #{encoder_forward.1} parent=103 // pred_check
          %p2009 = pneg %p317
        $region106: #{encoder_forward.1} parent=103 // pred_check_branch
          %2011 = sbr.rel (%p2009) target = $region108
        $region107: #{encoder_forward.1} parent=103 // pred_region
          %s2012 = sand.u32 %s302, 1
          %s2013 = scalar_lea.sflag [#allocation5], %s2012
          %s2014 = sand.u32 %s302, 1
          %s2015 = smul.addr %s2014, 16
          %s2016 = scalar_lea.vmem [#allocation15], %s2015
          %2017 = dma.done %s2013, 256
        $region108: #{encoder_forward.1} parent=103 // pred_fallthru
          _
      $region104: #{encoder_forward.1} parent=5 // pred_fallthru
        _
    $region6: #{encoder_forward.1} parent=1 // loop_footer
      %s35 = sadd.s32 1, %s31
    $region7: #{encoder_forward.1} parent=1 // loop_footer_branch
      %30 = sbr.rel target = $region3
    $region8: #{encoder_forward.1} parent=1 // loop_exit
      _
    %2018 = vsyncpa [#allocation4], 1
    %s2019 = scalar_lea.sflag [#allocation4], 1
    %2020 = vsyncpa %s2019, 1
    %2021 = vsyncpa [#allocation7], 1
    %s2022 = scalar_lea.sflag [#allocation7], 1
    %2023 = vsyncpa %s2022, 1
    %2024 = vsyncpa [#allocation10], 1
    %s2025 = scalar_lea.sflag [#allocation10], 1
    %2026 = vsyncpa %s2025, 1
    %2027 = vsyncpa [#allocation13], 1
    %s2028 = scalar_lea.sflag [#allocation13], 1
    %2029 = vsyncpa %s2028, 1
    %2030 = vsyncpa [#allocation5], 1
    %s2031 = scalar_lea.sflag [#allocation5], 1
    %2032 = vsyncpa %s2031, 1

</llo_original>
